<compile_context>
chip_gen: v5e
topology: v5e:2x2
jax: 0.10.0
libtpu: 0.0.40
codegen_flags: <defaults>
</compile_context>

<pallas_src>
import jax
import jax.numpy as jnp
from jax.experimental import pallas as pl
from jax.experimental.pallas import tpu as pltpu


# ---------------------------------------------------------------------------
# Soft-clamp helpers (shared by the Pallas kernel and the pure-JAX reference)
# ---------------------------------------------------------------------------
def _atan_poly(x):
    """Odd minimax-polynomial arctan approximation (|err| ~ 1e-5).

    Uses only mul/add/div/abs/where so it is guaranteed to lower in Mosaic.
    TODO(synk): switch to exact jnp.arctan once lax.atan lowering in
    Pallas/Mosaic is confirmed on every target TPU generation.
    TODO(synk): move the |x|>1 reciprocal to pl.reciprocal(approx=True) (EUP
    slot) if bundle dumps show the VALU (not the exp/EUP path) saturates first.
    """
    ax = jnp.abs(x)
    big = ax > 1.0
    t = jnp.where(big, 1.0 / jnp.maximum(ax, 1e-30), ax)   # t in [0, 1]
    z = t * t
    p = -0.0117212
    p = p * z + 0.05265332
    p = p * z - 0.11643287
    p = p * z + 0.19354346
    p = p * z - 0.33262347
    p = p * z + 0.99997726
    r = t * p
    r = jnp.where(big, (jnp.pi * 0.5) - r, r)
    return jnp.where(x < 0.0, -r, r)


def _soft_clamp(s_raw, clamp, activation):
    # FrEIA clamp: s = clamp * 0.636 * atan(u)  ("ATAN", FrEIA default)
    #          or  s = clamp * tanh(u)          ("TANH")
    if activation == "ATAN":
        return clamp * 0.636 * _atan_poly(s_raw)
    if activation == "TANH":
        return clamp * jnp.tanh(s_raw)
    raise ValueError(f"unknown clamp activation: {activation}")


# ---------------------------------------------------------------------------
# Fused Pallas kernel: whole flow stack (depth blocks) in one pass over x / c
# ---------------------------------------------------------------------------
def make_fused_flow_kernel(C, sl1, depth, clamp, activation):
    """depth x [ (ActNorm folded into 1x1 conv) + ConditionalAffineTransform +
    AffineCouplingOneSided ] on one (C, tile_p) activation tile.

    Transposed (channels, pixels) layout -> the big HW axis is lane-dense.
    Emits the transformed tile plus ONE channel- and block-summed log-scale row
    (for the per-sample Jacobian), accumulated across all blocks.
    """
    sl2 = C - sl1

    def kernel(x_ref, c_ref,
               wconv_ref, bconv_ref,
               ca_w1_ref, ca_b1_ref, ca_wst_ref, ca_bst_ref,
               cp_w1x_ref, cp_w1c_ref, cp_b1_ref, cp_wst_ref, cp_bst_ref,
               y_ref, s_ref):
        x = x_ref[...].astype(jnp.float32)
        c = c_ref[...].astype(jnp.float32)
        s_total = jnp.zeros((1, x.shape[1]), jnp.float32)

        # depth is a small static int: unroll the block loop.  Stacked weights
        # are indexed with a static d, stay resident in VMEM (constant
        # index_map), and x/c touch HBM exactly once for the whole stack.
        for d in range(depth):
            # --- ActNorm + invertible 1x1 conv, folded parameter-side:
            #     x <- W'_d x + b'_d
            x = jnp.dot(wconv_ref[d], x,
                        preferred_element_type=jnp.float32) + bconv_ref[d]

            # --- ConditionalAffineTransform: (s, t) = subnet(cond)
            hid = jnp.dot(ca_w1_ref[d], c,
                          preferred_element_type=jnp.float32) + ca_b1_ref[d]
            hid = jnp.maximum(hid, 0.0)                              # ReLU
            st = jnp.dot(ca_wst_ref[d], hid,
                         preferred_element_type=jnp.float32) + ca_bst_ref[d]
            s = _soft_clamp(st[:C, :], clamp, activation)
            t = st[C:, :]
            x = jnp.exp(s) * x + t
            s_total = s_total + jnp.sum(s, axis=0, keepdims=True)

            # --- AffineCouplingOneSided: (s2, t2) = subnet([x1, cond]),
            #     first layer split so no concat of [x1, cond] is formed.
            x1 = x[:sl1, :]
            x2 = x[sl1:, :]
            hid2 = (jnp.dot(cp_w1x_ref[d], x1, preferred_element_type=jnp.float32)
                    + jnp.dot(cp_w1c_ref[d], c, preferred_element_type=jnp.float32)
                    + cp_b1_ref[d])
            hid2 = jnp.maximum(hid2, 0.0)                            # ReLU
            st2 = jnp.dot(cp_wst_ref[d], hid2,
                          preferred_element_type=jnp.float32) + cp_bst_ref[d]
            s2 = _soft_clamp(st2[:sl2, :], clamp, activation)
            t2 = st2[sl2:, :]
            x = jnp.concatenate([x1, jnp.exp(s2) * x2 + t2], axis=0)
            s_total = s_total + jnp.sum(s2, axis=0, keepdims=True)

        y_ref[...] = x.astype(y_ref.dtype)
        s_ref[...] = s_total

    return kernel


def _choose_tile_p(HW, N, cap=2048):
    """Tile width along the lane-dense HW axis.

    Whole HW for small problems, else the largest multiple of 128 <= cap that
    divides HW.  Fused per-tile footprint at cap=2048 is ~1-2 MiB -> far below
    the scoped-VMEM default on v5e/v6e and within v7x's 64 MiB.  If N == 1 the
    axis is split so the parallel grid always has >= 2 steps (v7x: 2 TCs)."""
    if HW <= cap:
        tp = HW
    else:
        tp = None
        for t in range(cap - cap % 128, 127, -128):
            if HW % t == 0:
                tp = t
                break
        if tp is None:
            # TODO(synk): pad HW to a multiple of 128 and mask the pad columns
            # (and exclude them from the s-row sum) instead of one giant tile.
            tp = HW
    if N == 1 and tp == HW and HW % 256 == 0:
        tp = HW // 2        # guarantee >= 2 parallel grid steps (v7x megacore)
    return tp


def fused_flow_apply(x, c, sp, *, depth, tile_p, clamp, activation):
    """x, c: (N, C, HW) activations / condition.  sp: stacked (depth, ...) weights."""
    N, C, HW = x.shape
    assert HW % tile_p == 0
    sl1 = C // 2
    # Channel slices inside the kernel (x[:sl1], st[:C], ...) are sublane-aligned
    # when sl1 % 8 == 0 (f32); other channel counts are correct but use masked copies.
    kernel = make_fused_flow_kernel(C, sl1, depth, clamp, activation)

    act = pl.BlockSpec((None, C, tile_p), lambda n, p: (n, 0, p))
    srow = pl.BlockSpec((None, 1, tile_p), lambda n, p: (n, 0, p))
    wfull = lambda a: pl.BlockSpec(a.shape, lambda n, p: (0, 0, 0))

    keys = ("wconv", "bconv", "ca_w1", "ca_b1", "ca_wst", "ca_bst",
            "cp_w1x", "cp_w1c", "cp_b1", "cp_wst", "cp_bst")
    weights = [sp[k] for k in keys]

    return pl.pallas_call(
        kernel,
        out_shape=(jax.ShapeDtypeStruct((N, C, HW), x.dtype),
                   jax.ShapeDtypeStruct((N, 1, HW), jnp.float32)),
        grid=(N, HW // tile_p),
        in_specs=[act, act] + [wfull(w) for w in weights],
        out_specs=(act, srow),
        compiler_params=pltpu.CompilerParams(
            dimension_semantics=("parallel", "parallel")),
    )(x, c, *weights)


# ---------------------------------------------------------------------------
# Plain-JAX glue: squeeze, parameters, parameter-side folding
# ---------------------------------------------------------------------------
def squeeze_nchw(x):
    # IRevNetDownsampling / squeeze(): (N, C, H, W) -> (N, 4C, H/2, W/2); jac = 0.
    # TODO(synk): FrEIA's legacy_backend=True variant uses a different channel order.
    N, C, H, W = x.shape
    x = x.reshape(N, C, H // 2, 2, W // 2, 2)
    x = jnp.transpose(x, (0, 1, 3, 5, 2, 4))
    return x.reshape(N, 4 * C, H // 2, W // 2)


def init_params(key, channels, dim, depth, hidden):
    C = (2 ** dim) * channels
    keys = iter(jax.random.split(key, 128))
    nk = lambda: next(keys)

    actnorm, conv, conv_lad = [], [], []
    for _ in range(1 + depth):
        logs = 0.05 * jax.random.normal(nk(), (C,), jnp.float32)
        bias = 0.05 * jax.random.normal(nk(), (C,), jnp.float32)
        actnorm.append((logs, bias))
        w = jax.random.normal(nk(), (C, C), jnp.float32)
        q, _ = jnp.linalg.qr(w)                      # orthogonal init (Glow)
        conv.append(q)
        conv_lad.append(jnp.linalg.slogdet(q)[1])    # parameter-only constant

    # TODO(synk): actual subnet architecture comes from nn_settings['nn_type'];
    # a pointwise (1x1 conv) two-layer ReLU net is used here.
    def subnet(cin, cout):
        return dict(
            w1=0.1 * jax.random.normal(nk(), (cin, hidden), jnp.float32),
            b1=0.1 * jax.random.normal(nk(), (hidden,), jnp.float32),
            ws=0.1 * jax.random.normal(nk(), (hidden, cout), jnp.float32),
            bs=0.1 * jax.random.normal(nk(), (cout,), jnp.float32),
            wt=0.1 * jax.random.normal(nk(), (hidden, cout), jnp.float32),
            bt=0.1 * jax.random.normal(nk(), (cout,), jnp.float32),
        )

    sl1 = C // 2
    sl2 = C - sl1
    cond_aff = [subnet(C, C) for _ in range(depth)]
    coupling = [subnet(sl1 + C, sl2) for _ in range(depth)]
    return dict(actnorm=actnorm, conv1x1=conv, conv_logabsdet=conv_lad,
                cond_affine=cond_aff, coupling=coupling, depth=depth)


def prep_fused_params(params):
    """Parameter-only transforms:
       * fold ActNorm into the 1x1 conv (W' = W diag(e^logs), b' = W b),
       * compose the initial ActNorm+Conv pair into block 1,
       * transpose subnets to the (C, P) layout, fuse scale/shift heads,
       * split the coupling first layer so no [x1, cond] concat is needed,
       * stack everything as (depth, ...) so one pallas_call covers all blocks."""
    depth = params["depth"]
    logs0, b0 = params["actnorm"][0]
    W0 = params["conv1x1"][0]
    C = W0.shape[0]
    sl1 = C // 2
    A_pre = W0 * jnp.exp(logs0)[None, :]
    c_pre = W0 @ b0

    keys = ("wconv", "bconv", "ca_w1", "ca_b1", "ca_wst", "ca_bst",
            "cp_w1x", "cp_w1c", "cp_b1", "cp_wst", "cp_bst")
    out = {k: [] for k in keys}

    for i in range(1, depth + 1):
        logs, b = params["actnorm"][i]
        W = params["conv1x1"][i]
        A = W * jnp.exp(logs)[None, :]
        cv = W @ b
        if i == 1:
            wc = A @ A_pre              # fold initial ActNorm+Conv pair in
            bc = A @ c_pre + cv
        else:
            wc, bc = A, cv
        ca = params["cond_affine"][i - 1]
        cp = params["coupling"][i - 1]
        hh = ca["w1"].shape[1]
        out["wconv"].append(wc)
        out["bconv"].append(bc.reshape(C, 1))
        out["ca_w1"].append(ca["w1"].T)                                    # (Hh, C)
        out["ca_b1"].append(ca["b1"].reshape(hh, 1))
        out["ca_wst"].append(jnp.concatenate([ca["ws"].T, ca["wt"].T], 0))  # (2C, Hh)
        out["ca_bst"].append(jnp.concatenate([ca["bs"], ca["bt"]]).reshape(-1, 1))
        out["cp_w1x"].append(cp["w1"][:sl1, :].T)                          # (Hh, sl1)
        out["cp_w1c"].append(cp["w1"][sl1:, :].T)                          # (Hh, C)
        out["cp_b1"].append(cp["b1"].reshape(hh, 1))
        out["cp_wst"].append(jnp.concatenate([cp["ws"].T, cp["wt"].T], 0))  # (2*sl2, Hh)
        out["cp_bst"].append(jnp.concatenate([cp["bs"], cp["bt"]]).reshape(-1, 1))

    return {k: jnp.stack(v, axis=0) for k, v in out.items()}


# ---------------------------------------------------------------------------
# Forward (encode) pass
# ---------------------------------------------------------------------------
def g_I_forward(h, D, logdet, params, clamp=2.0, clamp_activation="ATAN",
                reverse=False, storage_dtype=None):
    if reverse:
        # TODO(synk): decode (reverse) path of g_I not implemented.
        raise NotImplementedError("only encode (reverse=False) is implemented")

    depth = params["depth"]
    N = h.shape[0]
    hsq = squeeze_nchw(h)                  # IRevNetDownsampling, jac = 0
    Dsq = squeeze_nchw(D)                  # squeeze(D) condition
    _, C, Hs, Ws = hsq.shape
    HW = Hs * Ws
    tile_p = _choose_tile_p(HW, N)

    in_dtype = h.dtype
    x = hsq.reshape(N, C, HW)              # free reshape -> lane-dense HW axis
    c = Dsq.reshape(N, C, HW)
    if storage_dtype is not None:          # e.g. bf16 activation I/O on v6e/v7x
        x = x.astype(storage_dtype)
        c = c.astype(storage_dtype)

    sp = prep_fused_params(params)
    y, s_rows = fused_flow_apply(x, c, sp, depth=depth, tile_p=tile_p,
                                 clamp=clamp, activation=clamp_activation)

    # Parameter-only Jacobian constants (all 1 + depth ActNorm + 1x1-conv pairs).
    const = 0.0
    for i in range(1 + depth):
        logs_i, _ = params["actnorm"][i]
        const = const + jnp.sum(logs_i) + params["conv_logabsdet"][i]
    logdet = logdet + HW * const
    # Per-element log-scales of the two affine blocks were channel- and
    # block-summed in the kernel; only the per-sample HW reduction remains.
    logdet = logdet + jnp.sum(s_rows, axis=(1, 2))

    h_out = y.astype(in_dtype).reshape(N, C, Hs, Ws)
    return h_out, logdet


# ---------------------------------------------------------------------------
# Pure-JAX reference (channels-last layout) for correctness checking
# ---------------------------------------------------------------------------
def _mm(a, b):
    return jnp.dot(a, b, precision=jax.lax.Precision.HIGHEST)


def to_pc(x):     # (N, C, H, W) -> (N*H*W, C)
    N, C, H, W = x.shape
    return jnp.transpose(x, (0, 2, 3, 1)).reshape(N * H * W, C)


def from_pc(y, N, C, H, W):
    return jnp.transpose(y.reshape(N, H, W, C), (0, 3, 1, 2))


def reference_forward(h, D, logdet, params, clamp=2.0, clamp_activation="ATAN"):
    depth = params["depth"]
    N = h.shape[0]
    hsq = squeeze_nchw(h)
    Dsq = squeeze_nchw(D)
    _, C, Hs, Ws = hsq.shape
    HW = Hs * Ws
    sl1 = C // 2
    x = to_pc(hsq)
    c = to_pc(Dsq)
    for i in range(1 + depth):
        logs, bias = params["actnorm"][i]
        x = x * jnp.exp(logs) + bias
        logdet = logdet + HW * jnp.sum(logs)
        w = params["conv1x1"][i]
        x = _mm(x, w.T)
        logdet = logdet + HW * params["conv_logabsdet"][i]
        if i >= 1:
            p = params["cond_affine"][i - 1]
            hid = jnp.maximum(_mm(c, p["w1"]) + p["b1"], 0.0)
            s = _soft_clamp(_mm(hid, p["ws"]) + p["bs"], clamp, clamp_activation)
            t = _mm(hid, p["wt"]) + p["bt"]
            x = jnp.exp(s) * x + t
            logdet = logdet + jnp.sum(s.reshape(N, HW, C), axis=(1, 2))
            p = params["coupling"][i - 1]
            x1, x2 = x[:, :sl1], x[:, sl1:]
            hid = jnp.maximum(_mm(jnp.concatenate([x1, c], axis=1), p["w1"]) + p["b1"], 0.0)
            s2 = _soft_clamp(_mm(hid, p["ws"]) + p["bs"], clamp, clamp_activation)
            t2 = _mm(hid, p["wt"]) + p["bt"]
            x = jnp.concatenate([x1, jnp.exp(s2) * x2 + t2], axis=1)
            logdet = logdet + jnp.sum(s2.reshape(N, HW, C - sl1), axis=(1, 2))
    return from_pc(x, N, C, Hs, Ws), logdet


# ---------------------------------------------------------------------------
if __name__ == "__main__":
    key = jax.random.PRNGKey(0)
    k_h, k_D, k_p = jax.random.split(key, 3)

    N, channels, H, W = 2, 4, 16, 16
    dim, depth, hidden = 2, 2, 32

    h = jax.random.normal(k_h, (N, channels, H, W), jnp.float32)
    D = jax.random.normal(k_D, (N, channels, H, W), jnp.float32)
    logdet0 = jnp.zeros((N,), jnp.float32)
    params = init_params(k_p, channels=channels, dim=dim, depth=depth, hidden=hidden)

    # clamp / clamp_activation are explicit config (FrEIA defaults: 2.0, ATAN).
    fwd = jax.jit(lambda a, b, l: g_I_forward(a, b, l, params,
                                              clamp=2.0, clamp_activation="ATAN"))
    h_out, logdet = fwd(h, D, logdet0)
    jax.block_until_ready((h_out, logdet))

    assert h_out.shape == (N, (2 ** dim) * channels, H // 2, W // 2)
    assert logdet.shape == (N,)

    # correctness check of the fused Pallas path against the pure-JAX reference
    h_ref, ld_ref = reference_forward(h, D, logdet0, params,
                                      clamp=2.0, clamp_activation="ATAN")
    assert jnp.allclose(h_out, h_ref, rtol=1e-3, atol=1e-3), \
        float(jnp.max(jnp.abs(h_out - h_ref)))
    assert jnp.allclose(logdet, ld_ref, rtol=1e-3, atol=1e-3), \
        float(jnp.max(jnp.abs(logdet - ld_ref)))

    print("KERNEL_OK")
</pallas_src>

<mosaic_0001>
module attributes {stable_mosaic.version = 11 : i64} {
  func.func @kernel(%arg0: i32, %arg1: i32, %arg2: memref<1x16x64xf32, #tpu.memory_space<vmem>>, %arg3: memref<1x16x64xf32, #tpu.memory_space<vmem>>, %arg4: memref<2x16x16xf32, #tpu.memory_space<vmem>>, %arg5: memref<2x16x1xf32, #tpu.memory_space<vmem>>, %arg6: memref<2x32x16xf32, #tpu.memory_space<vmem>>, %arg7: memref<2x32x1xf32, #tpu.memory_space<vmem>>, %arg8: memref<2x32x32xf32, #tpu.memory_space<vmem>>, %arg9: memref<2x32x1xf32, #tpu.memory_space<vmem>>, %arg10: memref<2x32x8xf32, #tpu.memory_space<vmem>>, %arg11: memref<2x32x16xf32, #tpu.memory_space<vmem>>, %arg12: memref<2x32x1xf32, #tpu.memory_space<vmem>>, %arg13: memref<2x16x32xf32, #tpu.memory_space<vmem>>, %arg14: memref<2x16x1xf32, #tpu.memory_space<vmem>>, %arg15: memref<1x16x64xf32, #tpu.memory_space<vmem>>, %arg16: memref<1x1x64xf32, #tpu.memory_space<vmem>>) attributes {dimension_semantics = [#tpu.dimension_semantics<parallel>, #tpu.dimension_semantics<parallel>], iteration_bounds = array<i64: 2, 1>, scalar_prefetch = 0 : i64, scratch_operands = 0 : i64, tpu.core_type = #tpu.core_type<tc>, window_params = [{transform_indices = @transform_0, window_bounds = array<i64: 1, 16, 64>}, {transform_indices = @transform_1, window_bounds = array<i64: 1, 16, 64>}, {pipeline_mode = #tpu.pipeline_mode<synchronous>, transform_indices = @transform_2, window_bounds = array<i64: 2, 16, 16>}, {pipeline_mode = #tpu.pipeline_mode<synchronous>, transform_indices = @transform_3, window_bounds = array<i64: 2, 16, 1>}, {pipeline_mode = #tpu.pipeline_mode<synchronous>, transform_indices = @transform_4, window_bounds = array<i64: 2, 32, 16>}, {pipeline_mode = #tpu.pipeline_mode<synchronous>, transform_indices = @transform_5, window_bounds = array<i64: 2, 32, 1>}, {pipeline_mode = #tpu.pipeline_mode<synchronous>, transform_indices = @transform_6, window_bounds = array<i64: 2, 32, 32>}, {pipeline_mode = #tpu.pipeline_mode<synchronous>, transform_indices = @transform_7, window_bounds = array<i64: 2, 32, 1>}, {pipeline_mode = #tpu.pipeline_mode<synchronous>, transform_indices = @transform_8, window_bounds = array<i64: 2, 32, 8>}, {pipeline_mode = #tpu.pipeline_mode<synchronous>, transform_indices = @transform_9, window_bounds = array<i64: 2, 32, 16>}, {pipeline_mode = #tpu.pipeline_mode<synchronous>, transform_indices = @transform_10, window_bounds = array<i64: 2, 32, 1>}, {pipeline_mode = #tpu.pipeline_mode<synchronous>, transform_indices = @transform_11, window_bounds = array<i64: 2, 16, 32>}, {pipeline_mode = #tpu.pipeline_mode<synchronous>, transform_indices = @transform_12, window_bounds = array<i64: 2, 16, 1>}, {transform_indices = @transform_13, window_bounds = array<i64: 1, 16, 64>}, {transform_indices = @transform_14, window_bounds = array<i64: 1, 1, 64>}]} {
    %c0 = arith.constant 0 : index
    %c0_0 = arith.constant 0 : index
    %c0_1 = arith.constant 0 : index
    %0 = vector.load %arg2[%c0, %c0_0, %c0_1] : memref<1x16x64xf32, #tpu.memory_space<vmem>>, vector<1x16x64xf32>
    %1 = vector.shape_cast %0 : vector<1x16x64xf32> to vector<16x64xf32>
    %c0_2 = arith.constant 0 : index
    %c0_3 = arith.constant 0 : index
    %c0_4 = arith.constant 0 : index
    %2 = vector.load %arg3[%c0_2, %c0_3, %c0_4] : memref<1x16x64xf32, #tpu.memory_space<vmem>>, vector<1x16x64xf32>
    %3 = vector.shape_cast %2 : vector<1x16x64xf32> to vector<16x64xf32>
    %cst = arith.constant 0.000000e+00 : f32
    %4 = vector.broadcast %cst : f32 to vector<1x64xf32>
    %c0_5 = arith.constant 0 : index
    %c0_6 = arith.constant 0 : index
    %c0_7 = arith.constant 0 : index
    %5 = vector.load %arg4[%c0_5, %c0_6, %c0_7] : memref<2x16x16xf32, #tpu.memory_space<vmem>>, vector<1x16x16xf32>
    %6 = vector.shape_cast %5 : vector<1x16x16xf32> to vector<16x16xf32>
    %cst_8 = arith.constant dense<0.000000e+00> : vector<16x64xf32>
    %7 = tpu.matmul %6, %1, %cst_8 {dimension_numbers = #tpu.dot_dimension_numbers<[1], [0], [0], [1], [0, 0, 1, 1], [], []>} : vector<16x16xf32>, vector<16x64xf32>, vector<16x64xf32> -> vector<16x64xf32>
    %c0_9 = arith.constant 0 : index
    %c0_10 = arith.constant 0 : index
    %c0_11 = arith.constant 0 : index
    %8 = vector.load %arg5[%c0_9, %c0_10, %c0_11] : memref<2x16x1xf32, #tpu.memory_space<vmem>>, vector<1x16x1xf32>
    %9 = vector.shape_cast %8 : vector<1x16x1xf32> to vector<16x1xf32>
    %10 = vector.broadcast %9 : vector<16x1xf32> to vector<16x64xf32>
    %11 = arith.addf %7, %10 : vector<16x64xf32>
    %c0_12 = arith.constant 0 : index
    %c0_13 = arith.constant 0 : index
    %c0_14 = arith.constant 0 : index
    %12 = vector.load %arg6[%c0_12, %c0_13, %c0_14] : memref<2x32x16xf32, #tpu.memory_space<vmem>>, vector<1x32x16xf32>
    %13 = vector.shape_cast %12 : vector<1x32x16xf32> to vector<32x16xf32>
    %cst_15 = arith.constant dense<0.000000e+00> : vector<32x64xf32>
    %14 = tpu.matmul %13, %3, %cst_15 {dimension_numbers = #tpu.dot_dimension_numbers<[1], [0], [0], [1], [0, 0, 1, 1], [], []>} : vector<32x16xf32>, vector<16x64xf32>, vector<32x64xf32> -> vector<32x64xf32>
    %c0_16 = arith.constant 0 : index
    %c0_17 = arith.constant 0 : index
    %c0_18 = arith.constant 0 : index
    %15 = vector.load %arg7[%c0_16, %c0_17, %c0_18] : memref<2x32x1xf32, #tpu.memory_space<vmem>>, vector<1x32x1xf32>
    %16 = vector.shape_cast %15 : vector<1x32x1xf32> to vector<32x1xf32>
    %17 = vector.broadcast %16 : vector<32x1xf32> to vector<32x64xf32>
    %18 = arith.addf %14, %17 : vector<32x64xf32>
    %cst_19 = arith.constant 0.000000e+00 : f32
    %19 = vector.broadcast %cst_19 : f32 to vector<32x64xf32>
    %20 = arith.maximumf %18, %19 : vector<32x64xf32>
    %c0_20 = arith.constant 0 : index
    %c0_21 = arith.constant 0 : index
    %c0_22 = arith.constant 0 : index
    %21 = vector.load %arg8[%c0_20, %c0_21, %c0_22] : memref<2x32x32xf32, #tpu.memory_space<vmem>>, vector<1x32x32xf32>
    %22 = vector.shape_cast %21 : vector<1x32x32xf32> to vector<32x32xf32>
    %cst_23 = arith.constant dense<0.000000e+00> : vector<32x64xf32>
    %23 = tpu.matmul %22, %20, %cst_23 {dimension_numbers = #tpu.dot_dimension_numbers<[1], [0], [0], [1], [0, 0, 1, 1], [], []>} : vector<32x32xf32>, vector<32x64xf32>, vector<32x64xf32> -> vector<32x64xf32>
    %c0_24 = arith.constant 0 : index
    %c0_25 = arith.constant 0 : index
    %c0_26 = arith.constant 0 : index
    %24 = vector.load %arg9[%c0_24, %c0_25, %c0_26] : memref<2x32x1xf32, #tpu.memory_space<vmem>>, vector<1x32x1xf32>
    %25 = vector.shape_cast %24 : vector<1x32x1xf32> to vector<32x1xf32>
    %26 = vector.broadcast %25 : vector<32x1xf32> to vector<32x64xf32>
    %27 = arith.addf %23, %26 : vector<32x64xf32>
    %28 = vector.extract_strided_slice %27 {offsets = [0, 0], sizes = [16, 64], strides = [1, 1]} : vector<32x64xf32> to vector<16x64xf32>
    %29 = math.absf %28 : vector<16x64xf32>
    %cst_27 = arith.constant 1.000000e+00 : f32
    %30 = vector.broadcast %cst_27 : f32 to vector<16x64xf32>
    %31 = arith.cmpf ogt, %29, %30 : vector<16x64xf32>
    %cst_28 = arith.constant 1.000000e-30 : f32
    %32 = vector.broadcast %cst_28 : f32 to vector<16x64xf32>
    %33 = arith.maximumf %29, %32 : vector<16x64xf32>
    %cst_29 = arith.constant 1.000000e+00 : f32
    %34 = vector.broadcast %cst_29 : f32 to vector<16x64xf32>
    %35 = arith.divf %34, %33 : vector<16x64xf32>
    %36 = arith.select %31, %35, %29 : vector<16x64xi1>, vector<16x64xf32>
    %37 = arith.mulf %36, %36 : vector<16x64xf32>
    %cst_30 = arith.constant -1.172120e-02 : f32
    %38 = vector.broadcast %cst_30 : f32 to vector<16x64xf32>
    %39 = arith.mulf %38, %37 : vector<16x64xf32>
    %cst_31 = arith.constant 0.0526533201 : f32
    %40 = vector.broadcast %cst_31 : f32 to vector<16x64xf32>
    %41 = arith.addf %39, %40 : vector<16x64xf32>
    %42 = arith.mulf %41, %37 : vector<16x64xf32>
    %cst_32 = arith.constant 0.116432868 : f32
    %43 = vector.broadcast %cst_32 : f32 to vector<16x64xf32>
    %44 = arith.subf %42, %43 : vector<16x64xf32>
    %45 = arith.mulf %44, %37 : vector<16x64xf32>
    %cst_33 = arith.constant 0.193543464 : f32
    %46 = vector.broadcast %cst_33 : f32 to vector<16x64xf32>
    %47 = arith.addf %45, %46 : vector<16x64xf32>
    %48 = arith.mulf %47, %37 : vector<16x64xf32>
    %cst_34 = arith.constant 0.332623482 : f32
    %49 = vector.broadcast %cst_34 : f32 to vector<16x64xf32>
    %50 = arith.subf %48, %49 : vector<16x64xf32>
    %51 = arith.mulf %50, %37 : vector<16x64xf32>
    %cst_35 = arith.constant 0.999977231 : f32
    %52 = vector.broadcast %cst_35 : f32 to vector<16x64xf32>
    %53 = arith.addf %51, %52 : vector<16x64xf32>
    %54 = arith.mulf %36, %53 : vector<16x64xf32>
    %cst_36 = arith.constant 1.57079637 : f32
    %55 = vector.broadcast %cst_36 : f32 to vector<16x64xf32>
    %56 = arith.subf %55, %54 : vector<16x64xf32>
    %57 = arith.select %31, %56, %54 : vector<16x64xi1>, vector<16x64xf32>
    %cst_37 = arith.constant 0.000000e+00 : f32
    %58 = vector.broadcast %cst_37 : f32 to vector<16x64xf32>
    %59 = arith.cmpf olt, %28, %58 : vector<16x64xf32>
    %cst_38 = arith.constant 0.000000e+00 : f32
    %60 = vector.broadcast %cst_38 : f32 to vector<16x64xf32>
    %61 = arith.subf %60, %57 : vector<16x64xf32>
    %62 = arith.select %59, %61, %57 : vector<16x64xi1>, vector<16x64xf32>
    %cst_39 = arith.constant 1.272000e+00 : f32
    %63 = vector.broadcast %cst_39 : f32 to vector<16x64xf32>
    %64 = arith.mulf %63, %62 : vector<16x64xf32>
    %65 = vector.extract_strided_slice %27 {offsets = [16, 0], sizes = [16, 64], strides = [1, 1]} : vector<32x64xf32> to vector<16x64xf32>
    %66 = math.exp %64 : vector<16x64xf32>
    %67 = arith.mulf %66, %11 : vector<16x64xf32>
    %68 = arith.addf %67, %65 : vector<16x64xf32>
    %cst_40 = arith.constant dense<0.000000e+00> : vector<64xf32>
    %69 = vector.multi_reduction <add>, %64, %cst_40 [0] : vector<16x64xf32> to vector<64xf32>
    %70 = vector.shape_cast %69 : vector<64xf32> to vector<1x64xf32>
    %71 = arith.addf %4, %70 : vector<1x64xf32>
    %72 = vector.extract_strided_slice %68 {offsets = [0, 0], sizes = [8, 64], strides = [1, 1]} : vector<16x64xf32> to vector<8x64xf32>
    %73 = vector.extract_strided_slice %68 {offsets = [8, 0], sizes = [8, 64], strides = [1, 1]} : vector<16x64xf32> to vector<8x64xf32>
    %c0_41 = arith.constant 0 : index
    %c0_42 = arith.constant 0 : index
    %c0_43 = arith.constant 0 : index
    %74 = vector.load %arg10[%c0_41, %c0_42, %c0_43] : memref<2x32x8xf32, #tpu.memory_space<vmem>>, vector<1x32x8xf32>
    %75 = vector.shape_cast %74 : vector<1x32x8xf32> to vector<32x8xf32>
    %cst_44 = arith.constant dense<0.000000e+00> : vector<32x64xf32>
    %76 = tpu.matmul %75, %72, %cst_44 {dimension_numbers = #tpu.dot_dimension_numbers<[1], [0], [0], [1], [0, 0, 1, 1], [], []>} : vector<32x8xf32>, vector<8x64xf32>, vector<32x64xf32> -> vector<32x64xf32>
    %c0_45 = arith.constant 0 : index
    %c0_46 = arith.constant 0 : index
    %c0_47 = arith.constant 0 : index
    %77 = vector.load %arg11[%c0_45, %c0_46, %c0_47] : memref<2x32x16xf32, #tpu.memory_space<vmem>>, vector<1x32x16xf32>
    %78 = vector.shape_cast %77 : vector<1x32x16xf32> to vector<32x16xf32>
    %cst_48 = arith.constant dense<0.000000e+00> : vector<32x64xf32>
    %79 = tpu.matmul %78, %3, %cst_48 {dimension_numbers = #tpu.dot_dimension_numbers<[1], [0], [0], [1], [0, 0, 1, 1], [], []>} : vector<32x16xf32>, vector<16x64xf32>, vector<32x64xf32> -> vector<32x64xf32>
    %80 = arith.addf %76, %79 : vector<32x64xf32>
    %c0_49 = arith.constant 0 : index
    %c0_50 = arith.constant 0 : index
    %c0_51 = arith.constant 0 : index
    %81 = vector.load %arg12[%c0_49, %c0_50, %c0_51] : memref<2x32x1xf32, #tpu.memory_space<vmem>>, vector<1x32x1xf32>
    %82 = vector.shape_cast %81 : vector<1x32x1xf32> to vector<32x1xf32>
    %83 = vector.broadcast %82 : vector<32x1xf32> to vector<32x64xf32>
    %84 = arith.addf %80, %83 : vector<32x64xf32>
    %cst_52 = arith.constant 0.000000e+00 : f32
    %85 = vector.broadcast %cst_52 : f32 to vector<32x64xf32>
    %86 = arith.maximumf %84, %85 : vector<32x64xf32>
    %c0_53 = arith.constant 0 : index
    %c0_54 = arith.constant 0 : index
    %c0_55 = arith.constant 0 : index
    %87 = vector.load %arg13[%c0_53, %c0_54, %c0_55] : memref<2x16x32xf32, #tpu.memory_space<vmem>>, vector<1x16x32xf32>
    %88 = vector.shape_cast %87 : vector<1x16x32xf32> to vector<16x32xf32>
    %cst_56 = arith.constant dense<0.000000e+00> : vector<16x64xf32>
    %89 = tpu.matmul %88, %86, %cst_56 {dimension_numbers = #tpu.dot_dimension_numbers<[1], [0], [0], [1], [0, 0, 1, 1], [], []>} : vector<16x32xf32>, vector<32x64xf32>, vector<16x64xf32> -> vector<16x64xf32>
    %c0_57 = arith.constant 0 : index
    %c0_58 = arith.constant 0 : index
    %c0_59 = arith.constant 0 : index
    %90 = vector.load %arg14[%c0_57, %c0_58, %c0_59] : memref<2x16x1xf32, #tpu.memory_space<vmem>>, vector<1x16x1xf32>
    %91 = vector.shape_cast %90 : vector<1x16x1xf32> to vector<16x1xf32>
    %92 = vector.broadcast %91 : vector<16x1xf32> to vector<16x64xf32>
    %93 = arith.addf %89, %92 : vector<16x64xf32>
    %94 = vector.extract_strided_slice %93 {offsets = [0, 0], sizes = [8, 64], strides = [1, 1]} : vector<16x64xf32> to vector<8x64xf32>
    %95 = math.absf %94 : vector<8x64xf32>
    %cst_60 = arith.constant 1.000000e+00 : f32
    %96 = vector.broadcast %cst_60 : f32 to vector<8x64xf32>
    %97 = arith.cmpf ogt, %95, %96 : vector<8x64xf32>
    %cst_61 = arith.constant 1.000000e-30 : f32
    %98 = vector.broadcast %cst_61 : f32 to vector<8x64xf32>
    %99 = arith.maximumf %95, %98 : vector<8x64xf32>
    %cst_62 = arith.constant 1.000000e+00 : f32
    %100 = vector.broadcast %cst_62 : f32 to vector<8x64xf32>
    %101 = arith.divf %100, %99 : vector<8x64xf32>
    %102 = arith.select %97, %101, %95 : vector<8x64xi1>, vector<8x64xf32>
    %103 = arith.mulf %102, %102 : vector<8x64xf32>
    %cst_63 = arith.constant -1.172120e-02 : f32
    %104 = vector.broadcast %cst_63 : f32 to vector<8x64xf32>
    %105 = arith.mulf %104, %103 : vector<8x64xf32>
    %cst_64 = arith.constant 0.0526533201 : f32
    %106 = vector.broadcast %cst_64 : f32 to vector<8x64xf32>
    %107 = arith.addf %105, %106 : vector<8x64xf32>
    %108 = arith.mulf %107, %103 : vector<8x64xf32>
    %cst_65 = arith.constant 0.116432868 : f32
    %109 = vector.broadcast %cst_65 : f32 to vector<8x64xf32>
    %110 = arith.subf %108, %109 : vector<8x64xf32>
    %111 = arith.mulf %110, %103 : vector<8x64xf32>
    %cst_66 = arith.constant 0.193543464 : f32
    %112 = vector.broadcast %cst_66 : f32 to vector<8x64xf32>
    %113 = arith.addf %111, %112 : vector<8x64xf32>
    %114 = arith.mulf %113, %103 : vector<8x64xf32>
    %cst_67 = arith.constant 0.332623482 : f32
    %115 = vector.broadcast %cst_67 : f32 to vector<8x64xf32>
    %116 = arith.subf %114, %115 : vector<8x64xf32>
    %117 = arith.mulf %116, %103 : vector<8x64xf32>
    %cst_68 = arith.constant 0.999977231 : f32
    %118 = vector.broadcast %cst_68 : f32 to vector<8x64xf32>
    %119 = arith.addf %117, %118 : vector<8x64xf32>
    %120 = arith.mulf %102, %119 : vector<8x64xf32>
    %cst_69 = arith.constant 1.57079637 : f32
    %121 = vector.broadcast %cst_69 : f32 to vector<8x64xf32>
    %122 = arith.subf %121, %120 : vector<8x64xf32>
    %123 = arith.select %97, %122, %120 : vector<8x64xi1>, vector<8x64xf32>
    %cst_70 = arith.constant 0.000000e+00 : f32
    %124 = vector.broadcast %cst_70 : f32 to vector<8x64xf32>
    %125 = arith.cmpf olt, %94, %124 : vector<8x64xf32>
    %cst_71 = arith.constant 0.000000e+00 : f32
    %126 = vector.broadcast %cst_71 : f32 to vector<8x64xf32>
    %127 = arith.subf %126, %123 : vector<8x64xf32>
    %128 = arith.select %125, %127, %123 : vector<8x64xi1>, vector<8x64xf32>
    %cst_72 = arith.constant 1.272000e+00 : f32
    %129 = vector.broadcast %cst_72 : f32 to vector<8x64xf32>
    %130 = arith.mulf %129, %128 : vector<8x64xf32>
    %131 = vector.extract_strided_slice %93 {offsets = [8, 0], sizes = [8, 64], strides = [1, 1]} : vector<16x64xf32> to vector<8x64xf32>
    %132 = math.exp %130 : vector<8x64xf32>
    %133 = arith.mulf %132, %73 : vector<8x64xf32>
    %134 = arith.addf %133, %131 : vector<8x64xf32>
    %135 = tpu.concatenate %72, %134 in 0 : vector<8x64xf32>, vector<8x64xf32> -> vector<16x64xf32>
    %cst_73 = arith.constant dense<0.000000e+00> : vector<64xf32>
    %136 = vector.multi_reduction <add>, %130, %cst_73 [0] : vector<8x64xf32> to vector<64xf32>
    %137 = vector.shape_cast %136 : vector<64xf32> to vector<1x64xf32>
    %138 = arith.addf %71, %137 : vector<1x64xf32>
    %c1 = arith.constant 1 : index
    %c0_74 = arith.constant 0 : index
    %c0_75 = arith.constant 0 : index
    %139 = vector.load %arg4[%c1, %c0_74, %c0_75] : memref<2x16x16xf32, #tpu.memory_space<vmem>>, vector<1x16x16xf32>
    %140 = vector.shape_cast %139 : vector<1x16x16xf32> to vector<16x16xf32>
    %cst_76 = arith.constant dense<0.000000e+00> : vector<16x64xf32>
    %141 = tpu.matmul %140, %135, %cst_76 {dimension_numbers = #tpu.dot_dimension_numbers<[1], [0], [0], [1], [0, 0, 1, 1], [], []>} : vector<16x16xf32>, vector<16x64xf32>, vector<16x64xf32> -> vector<16x64xf32>
    %c1_77 = arith.constant 1 : index
    %c0_78 = arith.constant 0 : index
    %c0_79 = arith.constant 0 : index
    %142 = vector.load %arg5[%c1_77, %c0_78, %c0_79] : memref<2x16x1xf32, #tpu.memory_space<vmem>>, vector<1x16x1xf32>
    %143 = vector.shape_cast %142 : vector<1x16x1xf32> to vector<16x1xf32>
    %144 = vector.broadcast %143 : vector<16x1xf32> to vector<16x64xf32>
    %145 = arith.addf %141, %144 : vector<16x64xf32>
    %c1_80 = arith.constant 1 : index
    %c0_81 = arith.constant 0 : index
    %c0_82 = arith.constant 0 : index
    %146 = vector.load %arg6[%c1_80, %c0_81, %c0_82] : memref<2x32x16xf32, #tpu.memory_space<vmem>>, vector<1x32x16xf32>
    %147 = vector.shape_cast %146 : vector<1x32x16xf32> to vector<32x16xf32>
    %cst_83 = arith.constant dense<0.000000e+00> : vector<32x64xf32>
    %148 = tpu.matmul %147, %3, %cst_83 {dimension_numbers = #tpu.dot_dimension_numbers<[1], [0], [0], [1], [0, 0, 1, 1], [], []>} : vector<32x16xf32>, vector<16x64xf32>, vector<32x64xf32> -> vector<32x64xf32>
    %c1_84 = arith.constant 1 : index
    %c0_85 = arith.constant 0 : index
    %c0_86 = arith.constant 0 : index
    %149 = vector.load %arg7[%c1_84, %c0_85, %c0_86] : memref<2x32x1xf32, #tpu.memory_space<vmem>>, vector<1x32x1xf32>
    %150 = vector.shape_cast %149 : vector<1x32x1xf32> to vector<32x1xf32>
    %151 = vector.broadcast %150 : vector<32x1xf32> to vector<32x64xf32>
    %152 = arith.addf %148, %151 : vector<32x64xf32>
    %cst_87 = arith.constant 0.000000e+00 : f32
    %153 = vector.broadcast %cst_87 : f32 to vector<32x64xf32>
    %154 = arith.maximumf %152, %153 : vector<32x64xf32>
    %c1_88 = arith.constant 1 : index
    %c0_89 = arith.constant 0 : index
    %c0_90 = arith.constant 0 : index
    %155 = vector.load %arg8[%c1_88, %c0_89, %c0_90] : memref<2x32x32xf32, #tpu.memory_space<vmem>>, vector<1x32x32xf32>
    %156 = vector.shape_cast %155 : vector<1x32x32xf32> to vector<32x32xf32>
    %cst_91 = arith.constant dense<0.000000e+00> : vector<32x64xf32>
    %157 = tpu.matmul %156, %154, %cst_91 {dimension_numbers = #tpu.dot_dimension_numbers<[1], [0], [0], [1], [0, 0, 1, 1], [], []>} : vector<32x32xf32>, vector<32x64xf32>, vector<32x64xf32> -> vector<32x64xf32>
    %c1_92 = arith.constant 1 : index
    %c0_93 = arith.constant 0 : index
    %c0_94 = arith.constant 0 : index
    %158 = vector.load %arg9[%c1_92, %c0_93, %c0_94] : memref<2x32x1xf32, #tpu.memory_space<vmem>>, vector<1x32x1xf32>
    %159 = vector.shape_cast %158 : vector<1x32x1xf32> to vector<32x1xf32>
    %160 = vector.broadcast %159 : vector<32x1xf32> to vector<32x64xf32>
    %161 = arith.addf %157, %160 : vector<32x64xf32>
    %162 = vector.extract_strided_slice %161 {offsets = [0, 0], sizes = [16, 64], strides = [1, 1]} : vector<32x64xf32> to vector<16x64xf32>
    %163 = math.absf %162 : vector<16x64xf32>
    %cst_95 = arith.constant 1.000000e+00 : f32
    %164 = vector.broadcast %cst_95 : f32 to vector<16x64xf32>
    %165 = arith.cmpf ogt, %163, %164 : vector<16x64xf32>
    %cst_96 = arith.constant 1.000000e-30 : f32
    %166 = vector.broadcast %cst_96 : f32 to vector<16x64xf32>
    %167 = arith.maximumf %163, %166 : vector<16x64xf32>
    %cst_97 = arith.constant 1.000000e+00 : f32
    %168 = vector.broadcast %cst_97 : f32 to vector<16x64xf32>
    %169 = arith.divf %168, %167 : vector<16x64xf32>
    %170 = arith.select %165, %169, %163 : vector<16x64xi1>, vector<16x64xf32>
    %171 = arith.mulf %170, %170 : vector<16x64xf32>
    %cst_98 = arith.constant -1.172120e-02 : f32
    %172 = vector.broadcast %cst_98 : f32 to vector<16x64xf32>
    %173 = arith.mulf %172, %171 : vector<16x64xf32>
    %cst_99 = arith.constant 0.0526533201 : f32
    %174 = vector.broadcast %cst_99 : f32 to vector<16x64xf32>
    %175 = arith.addf %173, %174 : vector<16x64xf32>
    %176 = arith.mulf %175, %171 : vector<16x64xf32>
    %cst_100 = arith.constant 0.116432868 : f32
    %177 = vector.broadcast %cst_100 : f32 to vector<16x64xf32>
    %178 = arith.subf %176, %177 : vector<16x64xf32>
    %179 = arith.mulf %178, %171 : vector<16x64xf32>
    %cst_101 = arith.constant 0.193543464 : f32
    %180 = vector.broadcast %cst_101 : f32 to vector<16x64xf32>
    %181 = arith.addf %179, %180 : vector<16x64xf32>
    %182 = arith.mulf %181, %171 : vector<16x64xf32>
    %cst_102 = arith.constant 0.332623482 : f32
    %183 = vector.broadcast %cst_102 : f32 to vector<16x64xf32>
    %184 = arith.subf %182, %183 : vector<16x64xf32>
    %185 = arith.mulf %184, %171 : vector<16x64xf32>
    %cst_103 = arith.constant 0.999977231 : f32
    %186 = vector.broadcast %cst_103 : f32 to vector<16x64xf32>
    %187 = arith.addf %185, %186 : vector<16x64xf32>
    %188 = arith.mulf %170, %187 : vector<16x64xf32>
    %cst_104 = arith.constant 1.57079637 : f32
    %189 = vector.broadcast %cst_104 : f32 to vector<16x64xf32>
    %190 = arith.subf %189, %188 : vector<16x64xf32>
    %191 = arith.select %165, %190, %188 : vector<16x64xi1>, vector<16x64xf32>
    %cst_105 = arith.constant 0.000000e+00 : f32
    %192 = vector.broadcast %cst_105 : f32 to vector<16x64xf32>
    %193 = arith.cmpf olt, %162, %192 : vector<16x64xf32>
    %cst_106 = arith.constant 0.000000e+00 : f32
    %194 = vector.broadcast %cst_106 : f32 to vector<16x64xf32>
    %195 = arith.subf %194, %191 : vector<16x64xf32>
    %196 = arith.select %193, %195, %191 : vector<16x64xi1>, vector<16x64xf32>
    %cst_107 = arith.constant 1.272000e+00 : f32
    %197 = vector.broadcast %cst_107 : f32 to vector<16x64xf32>
    %198 = arith.mulf %197, %196 : vector<16x64xf32>
    %199 = vector.extract_strided_slice %161 {offsets = [16, 0], sizes = [16, 64], strides = [1, 1]} : vector<32x64xf32> to vector<16x64xf32>
    %200 = math.exp %198 : vector<16x64xf32>
    %201 = arith.mulf %200, %145 : vector<16x64xf32>
    %202 = arith.addf %201, %199 : vector<16x64xf32>
    %cst_108 = arith.constant dense<0.000000e+00> : vector<64xf32>
    %203 = vector.multi_reduction <add>, %198, %cst_108 [0] : vector<16x64xf32> to vector<64xf32>
    %204 = vector.shape_cast %203 : vector<64xf32> to vector<1x64xf32>
    %205 = arith.addf %138, %204 : vector<1x64xf32>
    %206 = vector.extract_strided_slice %202 {offsets = [0, 0], sizes = [8, 64], strides = [1, 1]} : vector<16x64xf32> to vector<8x64xf32>
    %207 = vector.extract_strided_slice %202 {offsets = [8, 0], sizes = [8, 64], strides = [1, 1]} : vector<16x64xf32> to vector<8x64xf32>
    %c1_109 = arith.constant 1 : index
    %c0_110 = arith.constant 0 : index
    %c0_111 = arith.constant 0 : index
    %208 = vector.load %arg10[%c1_109, %c0_110, %c0_111] : memref<2x32x8xf32, #tpu.memory_space<vmem>>, vector<1x32x8xf32>
    %209 = vector.shape_cast %208 : vector<1x32x8xf32> to vector<32x8xf32>
    %cst_112 = arith.constant dense<0.000000e+00> : vector<32x64xf32>
    %210 = tpu.matmul %209, %206, %cst_112 {dimension_numbers = #tpu.dot_dimension_numbers<[1], [0], [0], [1], [0, 0, 1, 1], [], []>} : vector<32x8xf32>, vector<8x64xf32>, vector<32x64xf32> -> vector<32x64xf32>
    %c1_113 = arith.constant 1 : index
    %c0_114 = arith.constant 0 : index
    %c0_115 = arith.constant 0 : index
    %211 = vector.load %arg11[%c1_113, %c0_114, %c0_115] : memref<2x32x16xf32, #tpu.memory_space<vmem>>, vector<1x32x16xf32>
    %212 = vector.shape_cast %211 : vector<1x32x16xf32> to vector<32x16xf32>
    %cst_116 = arith.constant dense<0.000000e+00> : vector<32x64xf32>
    %213 = tpu.matmul %212, %3, %cst_116 {dimension_numbers = #tpu.dot_dimension_numbers<[1], [0], [0], [1], [0, 0, 1, 1], [], []>} : vector<32x16xf32>, vector<16x64xf32>, vector<32x64xf32> -> vector<32x64xf32>
    %214 = arith.addf %210, %213 : vector<32x64xf32>
    %c1_117 = arith.constant 1 : index
    %c0_118 = arith.constant 0 : index
    %c0_119 = arith.constant 0 : index
    %215 = vector.load %arg12[%c1_117, %c0_118, %c0_119] : memref<2x32x1xf32, #tpu.memory_space<vmem>>, vector<1x32x1xf32>
    %216 = vector.shape_cast %215 : vector<1x32x1xf32> to vector<32x1xf32>
    %217 = vector.broadcast %216 : vector<32x1xf32> to vector<32x64xf32>
    %218 = arith.addf %214, %217 : vector<32x64xf32>
    %cst_120 = arith.constant 0.000000e+00 : f32
    %219 = vector.broadcast %cst_120 : f32 to vector<32x64xf32>
    %220 = arith.maximumf %218, %219 : vector<32x64xf32>
    %c1_121 = arith.constant 1 : index
    %c0_122 = arith.constant 0 : index
    %c0_123 = arith.constant 0 : index
    %221 = vector.load %arg13[%c1_121, %c0_122, %c0_123] : memref<2x16x32xf32, #tpu.memory_space<vmem>>, vector<1x16x32xf32>
    %222 = vector.shape_cast %221 : vector<1x16x32xf32> to vector<16x32xf32>
    %cst_124 = arith.constant dense<0.000000e+00> : vector<16x64xf32>
    %223 = tpu.matmul %222, %220, %cst_124 {dimension_numbers = #tpu.dot_dimension_numbers<[1], [0], [0], [1], [0, 0, 1, 1], [], []>} : vector<16x32xf32>, vector<32x64xf32>, vector<16x64xf32> -> vector<16x64xf32>
    %c1_125 = arith.constant 1 : index
    %c0_126 = arith.constant 0 : index
    %c0_127 = arith.constant 0 : index
    %224 = vector.load %arg14[%c1_125, %c0_126, %c0_127] : memref<2x16x1xf32, #tpu.memory_space<vmem>>, vector<1x16x1xf32>
    %225 = vector.shape_cast %224 : vector<1x16x1xf32> to vector<16x1xf32>
    %226 = vector.broadcast %225 : vector<16x1xf32> to vector<16x64xf32>
    %227 = arith.addf %223, %226 : vector<16x64xf32>
    %228 = vector.extract_strided_slice %227 {offsets = [0, 0], sizes = [8, 64], strides = [1, 1]} : vector<16x64xf32> to vector<8x64xf32>
    %229 = math.absf %228 : vector<8x64xf32>
    %cst_128 = arith.constant 1.000000e+00 : f32
    %230 = vector.broadcast %cst_128 : f32 to vector<8x64xf32>
    %231 = arith.cmpf ogt, %229, %230 : vector<8x64xf32>
    %cst_129 = arith.constant 1.000000e-30 : f32
    %232 = vector.broadcast %cst_129 : f32 to vector<8x64xf32>
    %233 = arith.maximumf %229, %232 : vector<8x64xf32>
    %cst_130 = arith.constant 1.000000e+00 : f32
    %234 = vector.broadcast %cst_130 : f32 to vector<8x64xf32>
    %235 = arith.divf %234, %233 : vector<8x64xf32>
    %236 = arith.select %231, %235, %229 : vector<8x64xi1>, vector<8x64xf32>
    %237 = arith.mulf %236, %236 : vector<8x64xf32>
    %cst_131 = arith.constant -1.172120e-02 : f32
    %238 = vector.broadcast %cst_131 : f32 to vector<8x64xf32>
    %239 = arith.mulf %238, %237 : vector<8x64xf32>
    %cst_132 = arith.constant 0.0526533201 : f32
    %240 = vector.broadcast %cst_132 : f32 to vector<8x64xf32>
    %241 = arith.addf %239, %240 : vector<8x64xf32>
    %242 = arith.mulf %241, %237 : vector<8x64xf32>
    %cst_133 = arith.constant 0.116432868 : f32
    %243 = vector.broadcast %cst_133 : f32 to vector<8x64xf32>
    %244 = arith.subf %242, %243 : vector<8x64xf32>
    %245 = arith.mulf %244, %237 : vector<8x64xf32>
    %cst_134 = arith.constant 0.193543464 : f32
    %246 = vector.broadcast %cst_134 : f32 to vector<8x64xf32>
    %247 = arith.addf %245, %246 : vector<8x64xf32>
    %248 = arith.mulf %247, %237 : vector<8x64xf32>
    %cst_135 = arith.constant 0.332623482 : f32
    %249 = vector.broadcast %cst_135 : f32 to vector<8x64xf32>
    %250 = arith.subf %248, %249 : vector<8x64xf32>
    %251 = arith.mulf %250, %237 : vector<8x64xf32>
    %cst_136 = arith.constant 0.999977231 : f32
    %252 = vector.broadcast %cst_136 : f32 to vector<8x64xf32>
    %253 = arith.addf %251, %252 : vector<8x64xf32>
    %254 = arith.mulf %236, %253 : vector<8x64xf32>
    %cst_137 = arith.constant 1.57079637 : f32
    %255 = vector.broadcast %cst_137 : f32 to vector<8x64xf32>
    %256 = arith.subf %255, %254 : vector<8x64xf32>
    %257 = arith.select %231, %256, %254 : vector<8x64xi1>, vector<8x64xf32>
    %cst_138 = arith.constant 0.000000e+00 : f32
    %258 = vector.broadcast %cst_138 : f32 to vector<8x64xf32>
    %259 = arith.cmpf olt, %228, %258 : vector<8x64xf32>
    %cst_139 = arith.constant 0.000000e+00 : f32
    %260 = vector.broadcast %cst_139 : f32 to vector<8x64xf32>
    %261 = arith.subf %260, %257 : vector<8x64xf32>
    %262 = arith.select %259, %261, %257 : vector<8x64xi1>, vector<8x64xf32>
    %cst_140 = arith.constant 1.272000e+00 : f32
    %263 = vector.broadcast %cst_140 : f32 to vector<8x64xf32>
    %264 = arith.mulf %263, %262 : vector<8x64xf32>
    %265 = vector.extract_strided_slice %227 {offsets = [8, 0], sizes = [8, 64], strides = [1, 1]} : vector<16x64xf32> to vector<8x64xf32>
    %266 = math.exp %264 : vector<8x64xf32>
    %267 = arith.mulf %266, %207 : vector<8x64xf32>
    %268 = arith.addf %267, %265 : vector<8x64xf32>
    %269 = tpu.concatenate %206, %268 in 0 : vector<8x64xf32>, vector<8x64xf32> -> vector<16x64xf32>
    %cst_141 = arith.constant dense<0.000000e+00> : vector<64xf32>
    %270 = vector.multi_reduction <add>, %264, %cst_141 [0] : vector<8x64xf32> to vector<64xf32>
    %271 = vector.shape_cast %270 : vector<64xf32> to vector<1x64xf32>
    %272 = arith.addf %205, %271 : vector<1x64xf32>
    %c0_142 = arith.constant 0 : index
    %c0_143 = arith.constant 0 : index
    %c0_144 = arith.constant 0 : index
    %273 = vector.load %arg15[%c0_142, %c0_143, %c0_144] : memref<1x16x64xf32, #tpu.memory_space<vmem>>, vector<1x16x64xf32>
    %274 = vector.shape_cast %273 : vector<1x16x64xf32> to vector<16x64xf32>
    %275 = vector.shape_cast %269 : vector<16x64xf32> to vector<1x16x64xf32>
    tpu.vector_store %arg15[%c0_142, %c0_143, %c0_144], %275 {strides = array<i32>} : memref<1x16x64xf32, #tpu.memory_space<vmem>>, vector<1x16x64xf32>,
    %c0_145 = arith.constant 0 : index
    %c0_146 = arith.constant 0 : index
    %c0_147 = arith.constant 0 : index
    %276 = vector.load %arg16[%c0_145, %c0_146, %c0_147] : memref<1x1x64xf32, #tpu.memory_space<vmem>>, vector<1x1x64xf32>
    %277 = vector.shape_cast %276 : vector<1x1x64xf32> to vector<1x64xf32>
    %278 = vector.shape_cast %272 : vector<1x64xf32> to vector<1x1x64xf32>
    tpu.vector_store %arg16[%c0_145, %c0_146, %c0_147], %278 {strides = array<i32>} : memref<1x1x64xf32, #tpu.memory_space<vmem>>, vector<1x1x64xf32>,
    return
  }
  func.func @transform_0(%arg0: i32, %arg1: i32) -> (i32, i32, i32) {
    %c0_i32 = arith.constant 0 : i32
    %c0_i32_0 = arith.constant 0 : i32
    return %arg0, %c0_i32, %arg1 : i32, i32, i32
  }
  func.func @transform_1(%arg0: i32, %arg1: i32) -> (i32, i32, i32) {
    %c0_i32 = arith.constant 0 : i32
    %c0_i32_0 = arith.constant 0 : i32
    return %arg0, %c0_i32, %arg1 : i32, i32, i32
  }
  func.func @transform_2(%arg0: i32, %arg1: i32) -> (i32, i32, i32) {
    %c0_i32 = arith.constant 0 : i32
    %c0_i32_0 = arith.constant 0 : i32
    %c0_i32_1 = arith.constant 0 : i32
    %c0_i32_2 = arith.constant 0 : i32
    return %c0_i32, %c0_i32_0, %c0_i32_1 : i32, i32, i32
  }
  func.func @transform_3(%arg0: i32, %arg1: i32) -> (i32, i32, i32) {
    %c0_i32 = arith.constant 0 : i32
    %c0_i32_0 = arith.constant 0 : i32
    %c0_i32_1 = arith.constant 0 : i32
    %c0_i32_2 = arith.constant 0 : i32
    return %c0_i32, %c0_i32_0, %c0_i32_1 : i32, i32, i32
  }
  func.func @transform_4(%arg0: i32, %arg1: i32) -> (i32, i32, i32) {
    %c0_i32 = arith.constant 0 : i32
    %c0_i32_0 = arith.constant 0 : i32
    %c0_i32_1 = arith.constant 0 : i32
    %c0_i32_2 = arith.constant 0 : i32
    return %c0_i32, %c0_i32_0, %c0_i32_1 : i32, i32, i32
  }
  func.func @transform_5(%arg0: i32, %arg1: i32) -> (i32, i32, i32) {
    %c0_i32 = arith.constant 0 : i32
    %c0_i32_0 = arith.constant 0 : i32
    %c0_i32_1 = arith.constant 0 : i32
    %c0_i32_2 = arith.constant 0 : i32
    return %c0_i32, %c0_i32_0, %c0_i32_1 : i32, i32, i32
  }
  func.func @transform_6(%arg0: i32, %arg1: i32) -> (i32, i32, i32) {
    %c0_i32 = arith.constant 0 : i32
    %c0_i32_0 = arith.constant 0 : i32
    %c0_i32_1 = arith.constant 0 : i32
    %c0_i32_2 = arith.constant 0 : i32
    return %c0_i32, %c0_i32_0, %c0_i32_1 : i32, i32, i32
  }
  func.func @transform_7(%arg0: i32, %arg1: i32) -> (i32, i32, i32) {
    %c0_i32 = arith.constant 0 : i32
    %c0_i32_0 = arith.constant 0 : i32
    %c0_i32_1 = arith.constant 0 : i32
    %c0_i32_2 = arith.constant 0 : i32
    return %c0_i32, %c0_i32_0, %c0_i32_1 : i32, i32, i32
  }
  func.func @transform_8(%arg0: i32, %arg1: i32) -> (i32, i32, i32) {
    %c0_i32 = arith.constant 0 : i32
    %c0_i32_0 = arith.constant 0 : i32
    %c0_i32_1 = arith.constant 0 : i32
    %c0_i32_2 = arith.constant 0 : i32
    return %c0_i32, %c0_i32_0, %c0_i32_1 : i32, i32, i32
  }
  func.func @transform_9(%arg0: i32, %arg1: i32) -> (i32, i32, i32) {
    %c0_i32 = arith.constant 0 : i32
    %c0_i32_0 = arith.constant 0 : i32
    %c0_i32_1 = arith.constant 0 : i32
    %c0_i32_2 = arith.constant 0 : i32
    return %c0_i32, %c0_i32_0, %c0_i32_1 : i32, i32, i32
  }
  func.func @transform_10(%arg0: i32, %arg1: i32) -> (i32, i32, i32) {
    %c0_i32 = arith.constant 0 : i32
    %c0_i32_0 = arith.constant 0 : i32
    %c0_i32_1 = arith.constant 0 : i32
    %c0_i32_2 = arith.constant 0 : i32
    return %c0_i32, %c0_i32_0, %c0_i32_1 : i32, i32, i32
  }
  func.func @transform_11(%arg0: i32, %arg1: i32) -> (i32, i32, i32) {
    %c0_i32 = arith.constant 0 : i32
    %c0_i32_0 = arith.constant 0 : i32
    %c0_i32_1 = arith.constant 0 : i32
    %c0_i32_2 = arith.constant 0 : i32
    return %c0_i32, %c0_i32_0, %c0_i32_1 : i32, i32, i32
  }
  func.func @transform_12(%arg0: i32, %arg1: i32) -> (i32, i32, i32) {
    %c0_i32 = arith.constant 0 : i32
    %c0_i32_0 = arith.constant 0 : i32
    %c0_i32_1 = arith.constant 0 : i32
    %c0_i32_2 = arith.constant 0 : i32
    return %c0_i32, %c0_i32_0, %c0_i32_1 : i32, i32, i32
  }
  func.func @transform_13(%arg0: i32, %arg1: i32) -> (i32, i32, i32) {
    %c0_i32 = arith.constant 0 : i32
    %c0_i32_0 = arith.constant 0 : i32
    return %arg0, %c0_i32, %arg1 : i32, i32, i32
  }
  func.func @transform_14(%arg0: i32, %arg1: i32) -> (i32, i32, i32) {
    %c0_i32 = arith.constant 0 : i32
    %c0_i32_0 = arith.constant 0 : i32
    return %arg0, %c0_i32, %arg1 : i32, i32, i32
  }
}

</mosaic_0001>

<llo_original>
// kernel: _lambda_.1
$region0: #{_lambda_.1}
  #allocation0 [shape = 'u32[]', space=smem, size = 0x4, offset = 0x4, fixed_abs, tag = 'smem constant byte address 0x4 - core index']
  #allocation1 [shape = 'u32[72,128]{1,0:T(1,128)}', space=vmem, size = 0x9000, scoped, tag = 'internal scratch']
  %s0 = inlined_call_operand.vmem [shape: f32[2,16,64], index: 0, kind: input, shape index: {}]
  %s1 = inlined_call_operand.vmem [shape: f32[2,16,64], index: 1, kind: input, shape index: {}]
  %s2 = inlined_call_operand.vmem [shape: f32[2,16,16], index: 2, kind: input, shape index: {}]
  %s3 = inlined_call_operand.vmem [shape: f32[2,16,1], index: 3, kind: input, shape index: {}]
  %s4 = inlined_call_operand.vmem [shape: f32[2,32,16], index: 4, kind: input, shape index: {}]
  %s5 = inlined_call_operand.vmem [shape: f32[2,32,1], index: 5, kind: input, shape index: {}]
  %s6 = inlined_call_operand.vmem [shape: f32[2,32,32], index: 6, kind: input, shape index: {}]
  %s7 = inlined_call_operand.vmem [shape: f32[2,32,1], index: 7, kind: input, shape index: {}]
  %s8 = inlined_call_operand.vmem [shape: f32[2,32,8], index: 8, kind: input, shape index: {}]
  %s9 = inlined_call_operand.vmem [shape: f32[2,32,16], index: 9, kind: input, shape index: {}]
  %s10 = inlined_call_operand.vmem [shape: f32[2,32,1], index: 10, kind: input, shape index: {}]
  %s11 = inlined_call_operand.vmem [shape: f32[2,16,32], index: 11, kind: input, shape index: {}]
  %s12 = inlined_call_operand.vmem [shape: f32[2,16,1], index: 12, kind: input, shape index: {}]
  %s13 = inlined_call_operand.vmem [shape: f32[2,16,64], index: 13, kind: output, shape index: {0}]
  %s14 = inlined_call_operand.vmem [shape: f32[2,1,64], index: 14, kind: output, shape index: {1}]
  %15 = xla_tuple %s13, %s14
  %s16 = sld [smem:[#allocation0]]
  $region93: #{_lambda_.1} parent=0
    _
  %s18 = ssub.s32 1, %s16
  %s19 = scalar_select 0, %s18, %s16
  loop: start=0, step=1, limit=4
  $region2: #{_lambda_.1} parent=0 // loop_pre_header
    _
  $region3: #{_lambda_.1} parent=0 // loop_header
    %s21 = sphi 0, %s25
    %p22 = scmp.ge.s32.totalorder %s21, 4
    %s28 = sphi 0, %s40
    %s29 = sphi 0, %s36
    %s30 = sphi 0, %s28
    %s31 = sphi 0, %s29
    %s32 = sphi 0, %s30
    %s33 = sphi 0, %s31
    %s45 = sphi 0, %s47
    %s48 = sphi 0, %s45
    %s49 = sphi 0, %s48
    %s65 = sphi 0, %s49
    %s73 = sphi 0, %s75
    %s76 = sphi 0, %s73
    %s77 = sphi 0, %s76
    %s93 = sphi 0, %s77
    %s97 = sphi 0, %s97
    %s99 = sphi 0, %s97
    %s100 = sphi 0, %s99
    %s114 = sphi 0, %s100
    %s118 = sphi 0, %s118
    %s120 = sphi 0, %s118
    %s121 = sphi 0, %s120
    %s135 = sphi 0, %s121
    %s139 = sphi 0, %s139
    %s141 = sphi 0, %s139
    %s142 = sphi 0, %s141
    %s156 = sphi 0, %s142
    %s160 = sphi 0, %s160
    %s162 = sphi 0, %s160
    %s163 = sphi 0, %s162
    %s177 = sphi 0, %s163
    %s181 = sphi 0, %s181
    %s183 = sphi 0, %s181
    %s184 = sphi 0, %s183
    %s198 = sphi 0, %s184
    %s202 = sphi 0, %s202
    %s204 = sphi 0, %s202
    %s205 = sphi 0, %s204
    %s219 = sphi 0, %s205
    %s223 = sphi 0, %s223
    %s225 = sphi 0, %s223
    %s226 = sphi 0, %s225
    %s240 = sphi 0, %s226
    %s244 = sphi 0, %s244
    %s246 = sphi 0, %s244
    %s247 = sphi 0, %s246
    %s261 = sphi 0, %s247
    %s265 = sphi 0, %s265
    %s267 = sphi 0, %s265
    %s268 = sphi 0, %s267
    %s282 = sphi 0, %s268
    %s286 = sphi 0, %s286
    %s288 = sphi 0, %s286
    %s289 = sphi 0, %s288
    %s303 = sphi 0, %s289
    %s307 = sphi 0, %s307
    %s309 = sphi 0, %s307
    %s310 = sphi 0, %s309
    %s324 = sphi 0, %s310
    %s332 = sphi 0, %s334
    %s335 = sphi 0, %s332
    %s336 = sphi 0, %s335
    %s352 = sphi 0, %s336
    %s360 = sphi 0, %s362
    %s363 = sphi 0, %s360
    %s364 = sphi 0, %s363
    %s380 = sphi 0, %s364
  $region4: #{_lambda_.1} parent=0 // loop_header_branch
    %24 = sbr.rel (%p22) target = $region8
  $region5: #{_lambda_.1} parent=0 // loop_body
    %s26 = ssub.s32 %s21, 1
    %s27 = ssub.s32 %s21, 2
    %s34 = sadd.s32 1, %s29
    %p35 = scmp.ge.s32.totalorder %s34, 1
    %s36 = scalar_select %p35, 0, %s34
    %s37 = sadd.s32 1, %s28
    %s38 = scalar_select %p35, %s37, %s28
    %p39 = scmp.ge.s32.totalorder %s38, 2
    %s40 = scalar_select %p39, 0, %s38
    %s41 = ssub.s32 %s28, %s40
    %s42 = ssub.s32 %s29, %s36
    %s43 = sor.u32 %s41, %s42
    %p44 = scmp.eq.s32.totalorder %s43, 0
    %s46 = sadd.s32 %s45, 1
    %s47 = scalar_select %p44, %s45, %s46
    %p50 = pneg %p44
    %p51 = scmp.eq.s32.totalorder %s21, 1
    %p52 = por %p50, %p51
    %p53 = scmp.ne.s32.totalorder %s45, %s48
    %p54 = scmp.eq.s32.totalorder %s21, 0
    %p55 = por %p53, %p54
    %p56 = scmp.ne.s32.totalorder %s45, %s48
    %p57 = scmp.eq.s32.totalorder %s26, 1
    %p58 = por %p56, %p57
    %p59 = scmp.ne.s32.totalorder %s48, %s49
    %p60 = scmp.eq.s32.totalorder %s26, 0
    %p61 = por %p59, %p60
    %p62 = scmp.ne.s32.totalorder %s48, %s49
    %p63 = scmp.eq.s32.totalorder %s27, 1
    %p64 = por %p62, %p63
    %p66 = scmp.ne.s32.totalorder %s49, %s65
    %p67 = scmp.eq.s32.totalorder %s27, 0
    %p68 = por %p66, %p67
    %s69 = ssub.s32 %s28, %s40
    %s70 = ssub.s32 %s29, %s36
    %s71 = sor.u32 %s69, %s70
    %p72 = scmp.eq.s32.totalorder %s71, 0
    %s74 = sadd.s32 %s73, 1
    %s75 = scalar_select %p72, %s73, %s74
    %p78 = pneg %p72
    %p79 = scmp.eq.s32.totalorder %s21, 1
    %p80 = por %p78, %p79
    %p81 = scmp.ne.s32.totalorder %s73, %s76
    %p82 = scmp.eq.s32.totalorder %s21, 0
    %p83 = por %p81, %p82
    %p84 = scmp.ne.s32.totalorder %s73, %s76
    %p85 = scmp.eq.s32.totalorder %s26, 1
    %p86 = por %p84, %p85
    %p87 = scmp.ne.s32.totalorder %s76, %s77
    %p88 = scmp.eq.s32.totalorder %s26, 0
    %p89 = por %p87, %p88
    %p90 = scmp.ne.s32.totalorder %s76, %s77
    %p91 = scmp.eq.s32.totalorder %s27, 1
    %p92 = por %p90, %p91
    %p94 = scmp.ne.s32.totalorder %s77, %s93
    %p95 = scmp.eq.s32.totalorder %s27, 0
    %p96 = por %p94, %p95
    %s98 = sadd.s32 %s97, 1
    %p101 = scmp.eq.s32.totalorder %s21, 1
    %p102 = scmp.ne.s32.totalorder %s97, %s99
    %p103 = scmp.eq.s32.totalorder %s21, 0
    %p104 = por %p102, %p103
    %p105 = scmp.ne.s32.totalorder %s97, %s99
    %p106 = scmp.eq.s32.totalorder %s26, 1
    %p107 = por %p105, %p106
    %p108 = scmp.ne.s32.totalorder %s99, %s100
    %p109 = scmp.eq.s32.totalorder %s26, 0
    %p110 = por %p108, %p109
    %p111 = scmp.ne.s32.totalorder %s99, %s100
    %p112 = scmp.eq.s32.totalorder %s27, 1
    %p113 = por %p111, %p112
    %p115 = scmp.ne.s32.totalorder %s100, %s114
    %p116 = scmp.eq.s32.totalorder %s27, 0
    %p117 = por %p115, %p116
    %s119 = sadd.s32 %s118, 1
    %p122 = scmp.eq.s32.totalorder %s21, 1
    %p123 = scmp.ne.s32.totalorder %s118, %s120
    %p124 = scmp.eq.s32.totalorder %s21, 0
    %p125 = por %p123, %p124
    %p126 = scmp.ne.s32.totalorder %s118, %s120
    %p127 = scmp.eq.s32.totalorder %s26, 1
    %p128 = por %p126, %p127
    %p129 = scmp.ne.s32.totalorder %s120, %s121
    %p130 = scmp.eq.s32.totalorder %s26, 0
    %p131 = por %p129, %p130
    %p132 = scmp.ne.s32.totalorder %s120, %s121
    %p133 = scmp.eq.s32.totalorder %s27, 1
    %p134 = por %p132, %p133
    %p136 = scmp.ne.s32.totalorder %s121, %s135
    %p137 = scmp.eq.s32.totalorder %s27, 0
    %p138 = por %p136, %p137
    %s140 = sadd.s32 %s139, 1
    %p143 = scmp.eq.s32.totalorder %s21, 1
    %p144 = scmp.ne.s32.totalorder %s139, %s141
    %p145 = scmp.eq.s32.totalorder %s21, 0
    %p146 = por %p144, %p145
    %p147 = scmp.ne.s32.totalorder %s139, %s141
    %p148 = scmp.eq.s32.totalorder %s26, 1
    %p149 = por %p147, %p148
    %p150 = scmp.ne.s32.totalorder %s141, %s142
    %p151 = scmp.eq.s32.totalorder %s26, 0
    %p152 = por %p150, %p151
    %p153 = scmp.ne.s32.totalorder %s141, %s142
    %p154 = scmp.eq.s32.totalorder %s27, 1
    %p155 = por %p153, %p154
    %p157 = scmp.ne.s32.totalorder %s142, %s156
    %p158 = scmp.eq.s32.totalorder %s27, 0
    %p159 = por %p157, %p158
    %s161 = sadd.s32 %s160, 1
    %p164 = scmp.eq.s32.totalorder %s21, 1
    %p165 = scmp.ne.s32.totalorder %s160, %s162
    %p166 = scmp.eq.s32.totalorder %s21, 0
    %p167 = por %p165, %p166
    %p168 = scmp.ne.s32.totalorder %s160, %s162
    %p169 = scmp.eq.s32.totalorder %s26, 1
    %p170 = por %p168, %p169
    %p171 = scmp.ne.s32.totalorder %s162, %s163
    %p172 = scmp.eq.s32.totalorder %s26, 0
    %p173 = por %p171, %p172
    %p174 = scmp.ne.s32.totalorder %s162, %s163
    %p175 = scmp.eq.s32.totalorder %s27, 1
    %p176 = por %p174, %p175
    %p178 = scmp.ne.s32.totalorder %s163, %s177
    %p179 = scmp.eq.s32.totalorder %s27, 0
    %p180 = por %p178, %p179
    %s182 = sadd.s32 %s181, 1
    %p185 = scmp.eq.s32.totalorder %s21, 1
    %p186 = scmp.ne.s32.totalorder %s181, %s183
    %p187 = scmp.eq.s32.totalorder %s21, 0
    %p188 = por %p186, %p187
    %p189 = scmp.ne.s32.totalorder %s181, %s183
    %p190 = scmp.eq.s32.totalorder %s26, 1
    %p191 = por %p189, %p190
    %p192 = scmp.ne.s32.totalorder %s183, %s184
    %p193 = scmp.eq.s32.totalorder %s26, 0
    %p194 = por %p192, %p193
    %p195 = scmp.ne.s32.totalorder %s183, %s184
    %p196 = scmp.eq.s32.totalorder %s27, 1
    %p197 = por %p195, %p196
    %p199 = scmp.ne.s32.totalorder %s184, %s198
    %p200 = scmp.eq.s32.totalorder %s27, 0
    %p201 = por %p199, %p200
    %s203 = sadd.s32 %s202, 1
    %p206 = scmp.eq.s32.totalorder %s21, 1
    %p207 = scmp.ne.s32.totalorder %s202, %s204
    %p208 = scmp.eq.s32.totalorder %s21, 0
    %p209 = por %p207, %p208
    %p210 = scmp.ne.s32.totalorder %s202, %s204
    %p211 = scmp.eq.s32.totalorder %s26, 1
    %p212 = por %p210, %p211
    %p213 = scmp.ne.s32.totalorder %s204, %s205
    %p214 = scmp.eq.s32.totalorder %s26, 0
    %p215 = por %p213, %p214
    %p216 = scmp.ne.s32.totalorder %s204, %s205
    %p217 = scmp.eq.s32.totalorder %s27, 1
    %p218 = por %p216, %p217
    %p220 = scmp.ne.s32.totalorder %s205, %s219
    %p221 = scmp.eq.s32.totalorder %s27, 0
    %p222 = por %p220, %p221
    %s224 = sadd.s32 %s223, 1
    %p227 = scmp.eq.s32.totalorder %s21, 1
    %p228 = scmp.ne.s32.totalorder %s223, %s225
    %p229 = scmp.eq.s32.totalorder %s21, 0
    %p230 = por %p228, %p229
    %p231 = scmp.ne.s32.totalorder %s223, %s225
    %p232 = scmp.eq.s32.totalorder %s26, 1
    %p233 = por %p231, %p232
    %p234 = scmp.ne.s32.totalorder %s225, %s226
    %p235 = scmp.eq.s32.totalorder %s26, 0
    %p236 = por %p234, %p235
    %p237 = scmp.ne.s32.totalorder %s225, %s226
    %p238 = scmp.eq.s32.totalorder %s27, 1
    %p239 = por %p237, %p238
    %p241 = scmp.ne.s32.totalorder %s226, %s240
    %p242 = scmp.eq.s32.totalorder %s27, 0
    %p243 = por %p241, %p242
    %s245 = sadd.s32 %s244, 1
    %p248 = scmp.eq.s32.totalorder %s21, 1
    %p249 = scmp.ne.s32.totalorder %s244, %s246
    %p250 = scmp.eq.s32.totalorder %s21, 0
    %p251 = por %p249, %p250
    %p252 = scmp.ne.s32.totalorder %s244, %s246
    %p253 = scmp.eq.s32.totalorder %s26, 1
    %p254 = por %p252, %p253
    %p255 = scmp.ne.s32.totalorder %s246, %s247
    %p256 = scmp.eq.s32.totalorder %s26, 0
    %p257 = por %p255, %p256
    %p258 = scmp.ne.s32.totalorder %s246, %s247
    %p259 = scmp.eq.s32.totalorder %s27, 1
    %p260 = por %p258, %p259
    %p262 = scmp.ne.s32.totalorder %s247, %s261
    %p263 = scmp.eq.s32.totalorder %s27, 0
    %p264 = por %p262, %p263
    %s266 = sadd.s32 %s265, 1
    %p269 = scmp.eq.s32.totalorder %s21, 1
    %p270 = scmp.ne.s32.totalorder %s265, %s267
    %p271 = scmp.eq.s32.totalorder %s21, 0
    %p272 = por %p270, %p271
    %p273 = scmp.ne.s32.totalorder %s265, %s267
    %p274 = scmp.eq.s32.totalorder %s26, 1
    %p275 = por %p273, %p274
    %p276 = scmp.ne.s32.totalorder %s267, %s268
    %p277 = scmp.eq.s32.totalorder %s26, 0
    %p278 = por %p276, %p277
    %p279 = scmp.ne.s32.totalorder %s267, %s268
    %p280 = scmp.eq.s32.totalorder %s27, 1
    %p281 = por %p279, %p280
    %p283 = scmp.ne.s32.totalorder %s268, %s282
    %p284 = scmp.eq.s32.totalorder %s27, 0
    %p285 = por %p283, %p284
    %s287 = sadd.s32 %s286, 1
    %p290 = scmp.eq.s32.totalorder %s21, 1
    %p291 = scmp.ne.s32.totalorder %s286, %s288
    %p292 = scmp.eq.s32.totalorder %s21, 0
    %p293 = por %p291, %p292
    %p294 = scmp.ne.s32.totalorder %s286, %s288
    %p295 = scmp.eq.s32.totalorder %s26, 1
    %p296 = por %p294, %p295
    %p297 = scmp.ne.s32.totalorder %s288, %s289
    %p298 = scmp.eq.s32.totalorder %s26, 0
    %p299 = por %p297, %p298
    %p300 = scmp.ne.s32.totalorder %s288, %s289
    %p301 = scmp.eq.s32.totalorder %s27, 1
    %p302 = por %p300, %p301
    %p304 = scmp.ne.s32.totalorder %s289, %s303
    %p305 = scmp.eq.s32.totalorder %s27, 0
    %p306 = por %p304, %p305
    %s308 = sadd.s32 %s307, 1
    %p311 = scmp.eq.s32.totalorder %s21, 1
    %p312 = scmp.ne.s32.totalorder %s307, %s309
    %p313 = scmp.eq.s32.totalorder %s21, 0
    %p314 = por %p312, %p313
    %p315 = scmp.ne.s32.totalorder %s307, %s309
    %p316 = scmp.eq.s32.totalorder %s26, 1
    %p317 = por %p315, %p316
    %p318 = scmp.ne.s32.totalorder %s309, %s310
    %p319 = scmp.eq.s32.totalorder %s26, 0
    %p320 = por %p318, %p319
    %p321 = scmp.ne.s32.totalorder %s309, %s310
    %p322 = scmp.eq.s32.totalorder %s27, 1
    %p323 = por %p321, %p322
    %p325 = scmp.ne.s32.totalorder %s310, %s324
    %p326 = scmp.eq.s32.totalorder %s27, 0
    %p327 = por %p325, %p326
    %s328 = ssub.s32 %s28, %s40
    %s329 = ssub.s32 %s29, %s36
    %s330 = sor.u32 %s328, %s329
    %p331 = scmp.eq.s32.totalorder %s330, 0
    %s333 = sadd.s32 %s332, 1
    %s334 = scalar_select %p331, %s332, %s333
    %p337 = pneg %p331
    %p338 = scmp.eq.s32.totalorder %s21, 1
    %p339 = por %p337, %p338
    %p340 = scmp.ne.s32.totalorder %s332, %s335
    %p341 = scmp.eq.s32.totalorder %s21, 0
    %p342 = por %p340, %p341
    %p343 = scmp.ne.s32.totalorder %s332, %s335
    %p344 = scmp.eq.s32.totalorder %s26, 1
    %p345 = por %p343, %p344
    %p346 = scmp.ne.s32.totalorder %s335, %s336
    %p347 = scmp.eq.s32.totalorder %s26, 0
    %p348 = por %p346, %p347
    %p349 = scmp.ne.s32.totalorder %s335, %s336
    %p350 = scmp.eq.s32.totalorder %s27, 1
    %p351 = por %p349, %p350
    %p353 = scmp.ne.s32.totalorder %s336, %s352
    %p354 = scmp.eq.s32.totalorder %s27, 0
    %p355 = por %p353, %p354
    %s356 = ssub.s32 %s28, %s40
    %s357 = ssub.s32 %s29, %s36
    %s358 = sor.u32 %s356, %s357
    %p359 = scmp.eq.s32.totalorder %s358, 0
    %s361 = sadd.s32 %s360, 1
    %s362 = scalar_select %p359, %s360, %s361
    %p365 = pneg %p359
    %p366 = scmp.eq.s32.totalorder %s21, 1
    %p367 = por %p365, %p366
    %p368 = scmp.ne.s32.totalorder %s360, %s363
    %p369 = scmp.eq.s32.totalorder %s21, 0
    %p370 = por %p368, %p369
    %p371 = scmp.ne.s32.totalorder %s360, %s363
    %p372 = scmp.eq.s32.totalorder %s26, 1
    %p373 = por %p371, %p372
    %p374 = scmp.ne.s32.totalorder %s363, %s364
    %p375 = scmp.eq.s32.totalorder %s26, 0
    %p376 = por %p374, %p375
    %p377 = scmp.ne.s32.totalorder %s363, %s364
    %p378 = scmp.eq.s32.totalorder %s27, 1
    %p379 = por %p377, %p378
    %p381 = scmp.ne.s32.totalorder %s364, %s380
    %p382 = scmp.eq.s32.totalorder %s27, 0
    %p383 = por %p381, %p382
    %p384 = scmp.le.s32.totalorder 1, %s21
    %p385 = scmp.lt.s32.totalorder %s21, 3
    %p386 = pnand %p384, %p385
    %p387 = pneg %p386
    // Predicated region
    $region9: #{_lambda_.1} parent=5 // pred_check
      _
    $region10: #{_lambda_.1} parent=5 // pred_check_branch
      %389 = sbr.rel (%p386) target = $region12
    $region11: #{_lambda_.1} parent=5 // pred_region
      %s390 = ssub.s32 %s21, 1
      // Predicated region
      $region13: #{_lambda_.1} parent=11 // pred_check
        %p391 = pneg %p110
      $region14: #{_lambda_.1} parent=11 // pred_check_branch
        %393 = sbr.rel (%p391) target = $region16
      $region15: #{_lambda_.1} parent=11 // pred_region
        _
      $region16: #{_lambda_.1} parent=11 // pred_fallthru
        _
      // Predicated region
      $region17: #{_lambda_.1} parent=11 // pred_check
        %p394 = pneg %p131
      $region18: #{_lambda_.1} parent=11 // pred_check_branch
        %396 = sbr.rel (%p394) target = $region20
      $region19: #{_lambda_.1} parent=11 // pred_region
        _
      $region20: #{_lambda_.1} parent=11 // pred_fallthru
        _
      // Predicated region
      $region21: #{_lambda_.1} parent=11 // pred_check
        %p397 = pneg %p152
      $region22: #{_lambda_.1} parent=11 // pred_check_branch
        %399 = sbr.rel (%p397) target = $region24
      $region23: #{_lambda_.1} parent=11 // pred_region
        _
      $region24: #{_lambda_.1} parent=11 // pred_fallthru
        _
      // Predicated region
      $region25: #{_lambda_.1} parent=11 // pred_check
        %p400 = pneg %p173
      $region26: #{_lambda_.1} parent=11 // pred_check_branch
        %402 = sbr.rel (%p400) target = $region28
      $region27: #{_lambda_.1} parent=11 // pred_region
        _
      $region28: #{_lambda_.1} parent=11 // pred_fallthru
        _
      // Predicated region
      $region29: #{_lambda_.1} parent=11 // pred_check
        %p403 = pneg %p194
      $region30: #{_lambda_.1} parent=11 // pred_check_branch
        %405 = sbr.rel (%p403) target = $region32
      $region31: #{_lambda_.1} parent=11 // pred_region
        _
      $region32: #{_lambda_.1} parent=11 // pred_fallthru
        _
      // Predicated region
      $region33: #{_lambda_.1} parent=11 // pred_check
        %p406 = pneg %p215
      $region34: #{_lambda_.1} parent=11 // pred_check_branch
        %408 = sbr.rel (%p406) target = $region36
      $region35: #{_lambda_.1} parent=11 // pred_region
        _
      $region36: #{_lambda_.1} parent=11 // pred_fallthru
        _
      // Predicated region
      $region37: #{_lambda_.1} parent=11 // pred_check
        %p409 = pneg %p236
      $region38: #{_lambda_.1} parent=11 // pred_check_branch
        %411 = sbr.rel (%p409) target = $region40
      $region39: #{_lambda_.1} parent=11 // pred_region
        _
      $region40: #{_lambda_.1} parent=11 // pred_fallthru
        _
      // Predicated region
      $region41: #{_lambda_.1} parent=11 // pred_check
        %p412 = pneg %p257
      $region42: #{_lambda_.1} parent=11 // pred_check_branch
        %414 = sbr.rel (%p412) target = $region44
      $region43: #{_lambda_.1} parent=11 // pred_region
        _
      $region44: #{_lambda_.1} parent=11 // pred_fallthru
        _
      // Predicated region
      $region45: #{_lambda_.1} parent=11 // pred_check
        %p415 = pneg %p278
      $region46: #{_lambda_.1} parent=11 // pred_check_branch
        %417 = sbr.rel (%p415) target = $region48
      $region47: #{_lambda_.1} parent=11 // pred_region
        _
      $region48: #{_lambda_.1} parent=11 // pred_fallthru
        _
      // Predicated region
      $region49: #{_lambda_.1} parent=11 // pred_check
        %p418 = pneg %p299
      $region50: #{_lambda_.1} parent=11 // pred_check_branch
        %420 = sbr.rel (%p418) target = $region52
      $region51: #{_lambda_.1} parent=11 // pred_region
        _
      $region52: #{_lambda_.1} parent=11 // pred_fallthru
        _
      // Predicated region
      $region53: #{_lambda_.1} parent=11 // pred_check
        %p421 = pneg %p320
      $region54: #{_lambda_.1} parent=11 // pred_check_branch
        %423 = sbr.rel (%p421) target = $region56
      $region55: #{_lambda_.1} parent=11 // pred_region
        _
      $region56: #{_lambda_.1} parent=11 // pred_fallthru
        _
    $region12: #{_lambda_.1} parent=5 // pred_fallthru
      _
    %p424 = scmp.lt.s32.totalorder %s21, 2
    // Predicated region
    $region57: #{_lambda_.1} parent=5 // pred_check
      %p425 = pneg %p424
    $region58: #{_lambda_.1} parent=5 // pred_check_branch
      %427 = sbr.rel (%p425) target = $region60
    $region59: #{_lambda_.1} parent=5 // pred_region
      // Predicated region
      $region61: #{_lambda_.1} parent=59 // pred_check
        %p428 = pneg %p55
      $region62: #{_lambda_.1} parent=59 // pred_check_branch
        %430 = sbr.rel (%p428) target = $region64
      $region63: #{_lambda_.1} parent=59 // pred_region
        %p431 = scmp.lt.s32.totalorder %s28, 1
        %s432 = scalar_select %p431, %s28, 1
        %p433 = scmp.lt.s32.totalorder %s29, 0
        %s434 = scalar_select %p433, %s29, 0
        %s435 = smul.addr %s432, 2
        %s436 = sadd.s32 %s434, %s435
        %s437 = smul.addr %s436, 8
        %s438 = scalar_lea.vmem %s0, %s437
      $region64: #{_lambda_.1} parent=59 // pred_fallthru
        _
      // Predicated region
      $region65: #{_lambda_.1} parent=59 // pred_check
        %p439 = pneg %p83
      $region66: #{_lambda_.1} parent=59 // pred_check_branch
        %441 = sbr.rel (%p439) target = $region68
      $region67: #{_lambda_.1} parent=59 // pred_region
        %p442 = scmp.lt.s32.totalorder %s28, 1
        %s443 = scalar_select %p442, %s28, 1
        %p444 = scmp.lt.s32.totalorder %s29, 0
        %s445 = scalar_select %p444, %s29, 0
        %s446 = smul.addr %s443, 2
        %s447 = sadd.s32 %s445, %s446
        %s448 = smul.addr %s447, 8
        %s449 = scalar_lea.vmem %s1, %s448
      $region68: #{_lambda_.1} parent=59 // pred_fallthru
        _
    $region60: #{_lambda_.1} parent=5 // pred_fallthru
      _
    %p450 = scmp.le.s32.totalorder 1, %s21
    %p451 = scmp.lt.s32.totalorder %s21, 3
    %p452 = pnand %p450, %p451
    %p453 = pneg %p452
    // Predicated region
    $region69: #{_lambda_.1} parent=5 // pred_check
      _
    $region70: #{_lambda_.1} parent=5 // pred_check_branch
      %455 = sbr.rel (%p452) target = $region72
    $region71: #{_lambda_.1} parent=5 // pred_region
      %s456 = ssub.s32 %s21, 1
      %p457 = scmp.lt.s32.totalorder %s30, 1
      %s458 = scalar_select %p457, %s30, 1
      %p459 = scmp.lt.s32.totalorder %s31, 0
      %s460 = scalar_select %p459, %s31, 0
      %s461 = smul.addr %s458, 2
      %s462 = sadd.s32 %s460, %s461
      %s463 = smul.addr %s462, 8
      %s464 = scalar_lea.vmem %s0, %s463
      %p465 = pneg %p61
      %p466 = pneg %p58
      %p467 = scmp.lt.s32.totalorder %s30, 1
      %s468 = scalar_select %p467, %s30, 1
      %p469 = scmp.lt.s32.totalorder %s31, 0
      %s470 = scalar_select %p469, %s31, 0
      %s471 = smul.addr %s468, 2
      %s472 = sadd.s32 %s470, %s471
      %s473 = smul.addr %s472, 8
      %s474 = scalar_lea.vmem %s1, %s473
      %p475 = pneg %p89
      %p476 = pneg %p86
      %p477 = pneg %p110
      %p478 = pneg %p107
      %p479 = pneg %p131
      %p480 = pneg %p128
      %p481 = pneg %p152
      %p482 = pneg %p149
      %p483 = pneg %p173
      %p484 = pneg %p170
      %p485 = pneg %p194
      %p486 = pneg %p191
      %p487 = pneg %p215
      %p488 = pneg %p212
      %p489 = pneg %p236
      %p490 = pneg %p233
      %p491 = pneg %p257
      %p492 = pneg %p254
      %p493 = pneg %p278
      %p494 = pneg %p275
      %p495 = pneg %p299
      %p496 = pneg %p296
      %p497 = pneg %p320
      %p498 = pneg %p317
      %p499 = pneg %p348
      %p500 = pneg %p345
      %p501 = scmp.lt.s32.totalorder %s30, 1
      %s502 = scalar_select %p501, %s30, 1
      %p503 = scmp.lt.s32.totalorder %s31, 0
      %s504 = scalar_select %p503, %s31, 0
      %s505 = smul.addr %s502, 2
      %s506 = sadd.s32 %s504, %s505
      %s507 = smul.addr %s506, 8
      %s508 = scalar_lea.vmem %s13, %s507
      %p509 = pneg %p376
      %p510 = pneg %p373
      %p511 = scmp.lt.s32.totalorder %s30, 1
      %s512 = scalar_select %p511, %s30, 1
      %p513 = scmp.lt.s32.totalorder %s31, 0
      %s514 = scalar_select %p513, %s31, 0
      %s515 = sadd.s32 %s514, %s512
      %s516 = scalar_lea.vmem %s14, %s515
      %p517 = scmp.lt.s32.totalorder %s30, 1
      %s518 = scalar_select %p517, %s30, 1
      %p519 = scmp.lt.s32.totalorder %s31, 0
      %s520 = scalar_select %p519, %s31, 0
      %s521 = smul.addr %s518, 2
      %s522 = sadd.s32 %s520, %s521
      %s523 = smul.addr %s522, 8
      %s524 = scalar_lea.vmem %s0, %s523
      %p525 = scmp.lt.s32.totalorder %s30, 1
      %s526 = scalar_select %p525, %s30, 1
      %p527 = scmp.lt.s32.totalorder %s31, 0
      %s528 = scalar_select %p527, %s31, 0
      %s529 = smul.addr %s526, 2
      %s530 = sadd.s32 %s528, %s529
      %s531 = smul.addr %s530, 8
      %s532 = scalar_lea.vmem %s1, %s531
      %p533 = scmp.lt.s32.totalorder %s30, 1
      %s534 = scalar_select %p533, %s30, 1
      %p535 = scmp.lt.s32.totalorder %s31, 0
      %s536 = scalar_select %p535, %s31, 0
      %s537 = smul.addr %s534, 2
      %s538 = sadd.s32 %s536, %s537
      %s539 = smul.addr %s538, 8
      %s540 = scalar_lea.vmem %s13, %s539
      %p541 = scmp.lt.s32.totalorder %s30, 1
      %s542 = scalar_select %p541, %s30, 1
      %p543 = scmp.lt.s32.totalorder %s31, 0
      %s544 = scalar_select %p543, %s31, 0
      %s545 = sadd.s32 %s544, %s542
      %s546 = scalar_lea.vmem %s14, %s545
      %v547 = vld [vmem:[%s524] sm:$0xff]
      %v548 = vld [vmem:[%s524 + $0x8] sm:$0xff]
      %v549 = vld [vmem:[%s532] sm:$0xff]
      %v550 = vld [vmem:[%s532 + $0x8] sm:$0xff]
      %v551 = vld [vmem:[%s2] sm:$0xff]
      %v552 = vld [vmem:[%s2 + $0x8] sm:$0xff]
      %v553 = vld [vmem:[%s3] sm:$0xff]
      %v554 = vld [vmem:[%s3 + $0x8] sm:$0xff]
      %556 = vset.pattern.permute.xlu0 0
      %557 = vperm.xlu0 %556, %v553
      %v558 = vpop.permute.xlu0 %557
      %561 = vset.pattern.permute.xlu0 0
      %562 = vperm.xlu0 %561, %v554
      %v563 = vpop.permute.xlu0 %562
      %vm565 = vcmask 130048
      %v567 = vsel %vm565, %v551, 0
      %v570 = vsel %vm565, %v552, 0
      %572 = vmatpush.msra.mxu0 0.0
      %573 = vmatpush.msra.mxu0 0.0
      %574 = vmatpush.msra.mxu0 0.0
      %575 = vmatpush.msra.mxu0 0.0
      %576 = vmatpush.msra.mxu0 0.0
      %577 = vmatpush.msra.mxu0 0.0
      %578 = vmatpush.msra.mxu0 0.0
      %579 = vmatpush.msra.mxu0 0.0
      %580 = vmatpush.msra.mxu0 0.0
      %581 = vmatpush.msra.mxu0 0.0
      %582 = vmatpush.msra.mxu0 0.0
      %583 = vmatpush.msra.mxu0 0.0
      %584 = vmatpush.msra.mxu0 0.0
      %585 = vmatpush.msra.mxu0 0.0
      %586 = vmatpush.msra.mxu0 %v548
      %587 = vmatpush.msra.mxu0 %v547
      %588 = vmatmul.f32.gmra.mxu0 %v567
      %v589 = vpop.f32.mrf.mxu0
      %v590 = vadd.f32 %v558, %v589
      %591 = vmatmul.f32.gmra.mxu0 %v570
      %v592 = vpop.f32.mrf.mxu0
      %v593 = vadd.f32 %v563, %v592
      %594 = vdwg.mxu0
      %v595 = vld [vmem:[%s4] sm:$0xff]
      %v596 = vld [vmem:[%s4 + $0x8] sm:$0xff]
      %v597 = vld [vmem:[%s4 + $0x10] sm:$0xff]
      %v598 = vld [vmem:[%s4 + $0x18] sm:$0xff]
      %v599 = vld [vmem:[%s5] sm:$0xff]
      %v600 = vld [vmem:[%s5 + $0x8] sm:$0xff]
      %v601 = vld [vmem:[%s5 + $0x10] sm:$0xff]
      %v602 = vld [vmem:[%s5 + $0x18] sm:$0xff]
      %604 = vset.pattern.permute.xlu0 0
      %605 = vperm.xlu0 %604, %v599
      %v606 = vpop.permute.xlu0 %605
      %609 = vset.pattern.permute.xlu0 0
      %610 = vperm.xlu0 %609, %v600
      %v611 = vpop.permute.xlu0 %610
      %614 = vset.pattern.permute.xlu0 0
      %615 = vperm.xlu0 %614, %v601
      %v616 = vpop.permute.xlu0 %615
      %619 = vset.pattern.permute.xlu0 0
      %620 = vperm.xlu0 %619, %v602
      %v621 = vpop.permute.xlu0 %620
      %v624 = vsel %vm565, %v595, 0
      %v627 = vsel %vm565, %v596, 0
      %v630 = vsel %vm565, %v597, 0
      %v633 = vsel %vm565, %v598, 0
      %635 = vmatpush.msra.mxu0 0.0
      %636 = vmatpush.msra.mxu0 0.0
      %637 = vmatpush.msra.mxu0 0.0
      %638 = vmatpush.msra.mxu0 0.0
      %639 = vmatpush.msra.mxu0 0.0
      %640 = vmatpush.msra.mxu0 0.0
      %641 = vmatpush.msra.mxu0 0.0
      %642 = vmatpush.msra.mxu0 0.0
      %643 = vmatpush.msra.mxu0 0.0
      %644 = vmatpush.msra.mxu0 0.0
      %645 = vmatpush.msra.mxu0 0.0
      %646 = vmatpush.msra.mxu0 0.0
      %647 = vmatpush.msra.mxu0 0.0
      %648 = vmatpush.msra.mxu0 0.0
      %649 = vmatpush.msra.mxu0 %v550
      %650 = vmatpush.msra.mxu0 %v549
      %651 = vmatmul.f32.gmra.mxu0 %v624
      %v652 = vpop.f32.mrf.mxu0
      %v653 = vadd.f32 %v606, %v652
      %654 = vmatmul.f32.gmra.mxu0 %v627
      %v655 = vpop.f32.mrf.mxu0
      %v656 = vadd.f32 %v611, %v655
      %657 = vmatmul.f32.gmra.mxu0 %v630
      %v658 = vpop.f32.mrf.mxu0
      %v659 = vadd.f32 %v616, %v658
      %660 = vmatmul.f32.gmra.mxu0 %v633
      %v661 = vpop.f32.mrf.mxu0
      %v662 = vadd.f32 %v621, %v661
      %663 = vdwg.mxu0
      %v664 = vmax.f32 %v653, 0.0
      %v665 = vmax.f32 %v656, 0.0
      %v666 = vmax.f32 %v659, 0.0
      %v667 = vmax.f32 %v662, 0.0
      %v668 = vld [vmem:[%s6] sm:$0xff]
      %v669 = vld [vmem:[%s6 + $0x8] sm:$0xff]
      %v670 = vld [vmem:[%s6 + $0x10] sm:$0xff]
      %v671 = vld [vmem:[%s6 + $0x18] sm:$0xff]
      %v672 = vld [vmem:[%s7] sm:$0xff]
      %v673 = vld [vmem:[%s7 + $0x8] sm:$0xff]
      %v674 = vld [vmem:[%s7 + $0x10] sm:$0xff]
      %v675 = vld [vmem:[%s7 + $0x18] sm:$0xff]
      %677 = vset.pattern.permute.xlu0 0
      %678 = vperm.xlu0 %677, %v672
      %v679 = vpop.permute.xlu0 %678
      %682 = vset.pattern.permute.xlu0 0
      %683 = vperm.xlu0 %682, %v673
      %v684 = vpop.permute.xlu0 %683
      %687 = vset.pattern.permute.xlu0 0
      %688 = vperm.xlu0 %687, %v674
      %v689 = vpop.permute.xlu0 %688
      %692 = vset.pattern.permute.xlu0 0
      %693 = vperm.xlu0 %692, %v675
      %v694 = vpop.permute.xlu0 %693
      %vm696 = vcmask 261120
      %v698 = vsel %vm696, %v668, 0
      %v701 = vsel %vm696, %v669, 0
      %v704 = vsel %vm696, %v670, 0
      %v707 = vsel %vm696, %v671, 0
      %709 = vmatpush.msra.mxu0 0.0
      %710 = vmatpush.msra.mxu0 0.0
      %711 = vmatpush.msra.mxu0 0.0
      %712 = vmatpush.msra.mxu0 0.0
      %713 = vmatpush.msra.mxu0 0.0
      %714 = vmatpush.msra.mxu0 0.0
      %715 = vmatpush.msra.mxu0 0.0
      %716 = vmatpush.msra.mxu0 0.0
      %717 = vmatpush.msra.mxu0 0.0
      %718 = vmatpush.msra.mxu0 0.0
      %719 = vmatpush.msra.mxu0 0.0
      %720 = vmatpush.msra.mxu0 0.0
      %721 = vmatpush.msra.mxu0 %v667
      %722 = vmatpush.msra.mxu0 %v666
      %723 = vmatpush.msra.mxu0 %v665
      %724 = vmatpush.msra.mxu0 %v664
      %725 = vmatmul.f32.gmra.mxu0 %v698
      %v726 = vpop.f32.mrf.mxu0
      %v727 = vadd.f32 %v679, %v726
      %728 = vmatmul.f32.gmra.mxu0 %v701
      %v729 = vpop.f32.mrf.mxu0
      %v730 = vadd.f32 %v684, %v729
      %731 = vmatmul.f32.gmra.mxu0 %v704
      %v732 = vpop.f32.mrf.mxu0
      %v733 = vadd.f32 %v689, %v732
      %734 = vmatmul.f32.gmra.mxu0 %v707
      %v735 = vpop.f32.mrf.mxu0
      %v736 = vadd.f32 %v694, %v735
      %737 = vdwg.mxu0
      %v738 = vand.u32 2147483647, %v727
      %v739 = vand.u32 2147483647, %v730
      %vm740 = vcmp.gt.f32.partialorder %v738, 1.0
      %vm741 = vcmp.gt.f32.partialorder %v739, 1.0
      %v742 = vmax.f32 %v738, 1e-30
      %v743 = vmax.f32 %v739, 1e-30
      %v744 = vrcp.pop %v742
      %v745 = vmul.f32 %v742, %v744
      %v746 = vsub.f32 1.0, %v745
      %v747 = vmul.f32 %v744, %v746
      %v748 = vadd.f32 %v744, %v747
      %vm749 = vweird.f32 %v742
      %vm750 = vweird.f32 %v744
      %vm751 = vmor %vm749, %vm750
      %v752 = vsel %vm751, %v744, %v748
      %v753 = vand.u32 2147483647, %v742
      %vm754 = vcmp.eq.f32.partialorder %v753, 8.507059e+37
      %v755 = vand.u32 %v742, 2147483648
      %v756 = vor.u32 1.1754944e-38, %v755
      %v757 = vsel %vm754, %v756, %v752
      %v758 = vmul.f32 1.0, %v757
      %v759 = vrcp.pop %v743
      %v760 = vmul.f32 %v743, %v759
      %v761 = vsub.f32 1.0, %v760
      %v762 = vmul.f32 %v759, %v761
      %v763 = vadd.f32 %v759, %v762
      %vm764 = vweird.f32 %v743
      %vm765 = vweird.f32 %v759
      %vm766 = vmor %vm764, %vm765
      %v767 = vsel %vm766, %v759, %v763
      %v768 = vand.u32 2147483647, %v743
      %vm769 = vcmp.eq.f32.partialorder %v768, 8.507059e+37
      %v770 = vand.u32 %v743, 2147483648
      %v771 = vor.u32 1.1754944e-38, %v770
      %v772 = vsel %vm769, %v771, %v767
      %v773 = vmul.f32 1.0, %v772
      %v774 = vsel %vm740, %v758, %v738
      %v775 = vsel %vm741, %v773, %v739
      %v776 = vmul.f32 %v774, %v774
      %v777 = vmul.f32 %v775, %v775
      %v778 = vmul.f32 %v776, -0.0117212
      %v779 = vmul.f32 %v777, -0.0117212
      %v780 = vadd.f32 %v778, 0.05265332
      %v781 = vadd.f32 %v779, 0.05265332
      %v782 = vmul.f32 %v780, %v776
      %v783 = vmul.f32 %v781, %v777
      %v784 = vsub.f32 %v782, 0.11643287
      %v785 = vsub.f32 %v783, 0.11643287
      %v786 = vmul.f32 %v784, %v776
      %v787 = vmul.f32 %v785, %v777
      %v788 = vadd.f32 %v786, 0.19354346
      %v789 = vadd.f32 %v787, 0.19354346
      %v790 = vmul.f32 %v788, %v776
      %v791 = vmul.f32 %v789, %v777
      %v792 = vsub.f32 %v790, 0.33262348
      %v793 = vsub.f32 %v791, 0.33262348
      %v794 = vmul.f32 %v792, %v776
      %v795 = vmul.f32 %v793, %v777
      %v796 = vadd.f32 %v794, 0.99997723
      %v797 = vadd.f32 %v795, 0.99997723
      %v798 = vmul.f32 %v774, %v796
      %v799 = vmul.f32 %v775, %v797
      %v800 = vsub.f32 1.5707964, %v798
      %v801 = vsub.f32 1.5707964, %v799
      %v802 = vsel %vm740, %v800, %v798
      %v803 = vsel %vm741, %v801, %v799
      %vm804 = vcmp.lt.f32.partialorder %v727, 0.0
      %vm805 = vcmp.lt.f32.partialorder %v730, 0.0
      %v806 = vsub.f32 0.0, %v802
      %v807 = vsub.f32 0.0, %v803
      %v808 = vsel %vm804, %v806, %v802
      %v809 = vsel %vm805, %v807, %v803
      %v810 = vmul.f32 %v808, 1.272
      %v811 = vmul.f32 %v809, 1.272
      %v812 = vmul.f32 %v810, 1.442695
      %v813 = vpow.pop %v812
      %v814 = vmul.f32 %v811, 1.442695
      %v815 = vpow.pop %v814
      %v816 = vmul.f32 %v813, %v590
      %v817 = vmul.f32 %v815, %v593
      %v818 = vadd.f32 %v816, %v733
      %v819 = vadd.f32 %v817, %v736
      %vm820 = vcmask 523264
      %v821 = vsel %vm820, %v810, 0.0
      %v822 = vsel %vm820, %v811, 0.0
      %v823 = vadd.f32 %v821, %v822
      %v824 = vrot.slane %v823, 4
      %v825 = vadd.f32 %v823, %v824
      %v826 = vrot.slane %v825, 2
      %v827 = vadd.f32 %v825, %v826
      %v828 = vrot.slane %v827, 1
      %v829 = vadd.f32 %v827, %v828
      %v830 = vadd.f32 %v829, 0.0
      %v831 = vld [vmem:[%s8] sm:$0xff]
      %v832 = vld [vmem:[%s8 + $0x8] sm:$0xff]
      %v833 = vld [vmem:[%s8 + $0x10] sm:$0xff]
      %v834 = vld [vmem:[%s8 + $0x18] sm:$0xff]
      %v835 = vld [vmem:[%s9] sm:$0xff]
      %v836 = vld [vmem:[%s9 + $0x8] sm:$0xff]
      %v837 = vld [vmem:[%s9 + $0x10] sm:$0xff]
      %v838 = vld [vmem:[%s9 + $0x18] sm:$0xff]
      %v840 = vsel %vm565, %v835, 0
      %v843 = vsel %vm565, %v836, 0
      %v846 = vsel %vm565, %v837, 0
      %v849 = vsel %vm565, %v838, 0
      %851 = vmatpush.msra.mxu0 0.0
      %852 = vmatpush.msra.mxu0 0.0
      %853 = vmatpush.msra.mxu0 0.0
      %854 = vmatpush.msra.mxu0 0.0
      %855 = vmatpush.msra.mxu0 0.0
      %856 = vmatpush.msra.mxu0 0.0
      %857 = vmatpush.msra.mxu0 0.0
      %858 = vmatpush.msra.mxu0 0.0
      %859 = vmatpush.msra.mxu0 0.0
      %860 = vmatpush.msra.mxu0 0.0
      %861 = vmatpush.msra.mxu0 0.0
      %862 = vmatpush.msra.mxu0 0.0
      %863 = vmatpush.msra.mxu0 0.0
      %864 = vmatpush.msra.mxu0 0.0
      %865 = vmatpush.msra.mxu0 %v550
      %866 = vmatpush.msra.mxu0 %v549
      %867 = vmatmul.f32.gmra.mxu0 %v840
      %v868 = vpop.f32.mrf.mxu0
      %v869 = vadd.f32 0.0, %v868
      %870 = vmatmul.f32.gmra.mxu0 %v843
      %v871 = vpop.f32.mrf.mxu0
      %v872 = vadd.f32 0.0, %v871
      %873 = vmatmul.f32.gmra.mxu0 %v846
      %v874 = vpop.f32.mrf.mxu0
      %v875 = vadd.f32 0.0, %v874
      %876 = vmatmul.f32.gmra.mxu0 %v849
      %v877 = vpop.f32.mrf.mxu0
      %v878 = vadd.f32 0.0, %v877
      %879 = vdwg.mxu0
      %vm880 = vcmask 64512
      %v882 = vsel %vm880, %v831, 0
      %v885 = vsel %vm880, %v832, 0
      %v888 = vsel %vm880, %v833, 0
      %v891 = vsel %vm880, %v834, 0
      %893 = vmatpush.msra.mxu0 0.0
      %894 = vmatpush.msra.mxu0 0.0
      %895 = vmatpush.msra.mxu0 0.0
      %896 = vmatpush.msra.mxu0 0.0
      %897 = vmatpush.msra.mxu0 0.0
      %898 = vmatpush.msra.mxu0 0.0
      %899 = vmatpush.msra.mxu0 0.0
      %900 = vmatpush.msra.mxu0 0.0
      %901 = vmatpush.msra.mxu0 0.0
      %902 = vmatpush.msra.mxu0 0.0
      %903 = vmatpush.msra.mxu0 0.0
      %904 = vmatpush.msra.mxu0 0.0
      %905 = vmatpush.msra.mxu0 0.0
      %906 = vmatpush.msra.mxu0 0.0
      %907 = vmatpush.msra.mxu0 0.0
      %908 = vmatpush.msra.mxu0 %v818
      %909 = vmatmul.f32.gmra.mxu0 %v882
      %v910 = vpop.f32.mrf.mxu0
      %v911 = vadd.f32 %v869, %v910
      %912 = vmatmul.f32.gmra.mxu0 %v885
      %v913 = vpop.f32.mrf.mxu0
      %v914 = vadd.f32 %v872, %v913
      %915 = vmatmul.f32.gmra.mxu0 %v888
      %v916 = vpop.f32.mrf.mxu0
      %v917 = vadd.f32 %v875, %v916
      %918 = vmatmul.f32.gmra.mxu0 %v891
      %v919 = vpop.f32.mrf.mxu0
      %v920 = vadd.f32 %v878, %v919
      %921 = vdwg.mxu0
      %v922 = vld [vmem:[%s10] sm:$0xff]
      %v923 = vld [vmem:[%s10 + $0x8] sm:$0xff]
      %v924 = vld [vmem:[%s10 + $0x10] sm:$0xff]
      %v925 = vld [vmem:[%s10 + $0x18] sm:$0xff]
      %927 = vset.pattern.permute.xlu0 0
      %928 = vperm.xlu0 %927, %v922
      %v929 = vpop.permute.xlu0 %928
      %932 = vset.pattern.permute.xlu0 0
      %933 = vperm.xlu0 %932, %v923
      %v934 = vpop.permute.xlu0 %933
      %937 = vset.pattern.permute.xlu0 0
      %938 = vperm.xlu0 %937, %v924
      %v939 = vpop.permute.xlu0 %938
      %942 = vset.pattern.permute.xlu0 0
      %943 = vperm.xlu0 %942, %v925
      %v944 = vpop.permute.xlu0 %943
      %v946 = vadd.f32 %v911, %v929
      %v947 = vadd.f32 %v914, %v934
      %v948 = vadd.f32 %v917, %v939
      %v949 = vadd.f32 %v920, %v944
      %v950 = vmax.f32 %v946, 0.0
      %v951 = vmax.f32 %v947, 0.0
      %v952 = vmax.f32 %v948, 0.0
      %v953 = vmax.f32 %v949, 0.0
      %v954 = vld [vmem:[%s11] sm:$0xff]
      %v955 = vld [vmem:[%s11 + $0x8] sm:$0xff]
      %v956 = vld [vmem:[%s12] sm:$0xff]
      %v957 = vld [vmem:[%s12 + $0x8] sm:$0xff]
      %959 = vset.pattern.permute.xlu0 0
      %960 = vperm.xlu0 %959, %v956
      %v961 = vpop.permute.xlu0 %960
      %964 = vset.pattern.permute.xlu0 0
      %965 = vperm.xlu0 %964, %v957
      %v966 = vpop.permute.xlu0 %965
      %v969 = vsel %vm696, %v954, 0
      %v972 = vsel %vm696, %v955, 0
      %974 = vmatpush.msra.mxu0 0.0
      %975 = vmatpush.msra.mxu0 0.0
      %976 = vmatpush.msra.mxu0 0.0
      %977 = vmatpush.msra.mxu0 0.0
      %978 = vmatpush.msra.mxu0 0.0
      %979 = vmatpush.msra.mxu0 0.0
      %980 = vmatpush.msra.mxu0 0.0
      %981 = vmatpush.msra.mxu0 0.0
      %982 = vmatpush.msra.mxu0 0.0
      %983 = vmatpush.msra.mxu0 0.0
      %984 = vmatpush.msra.mxu0 0.0
      %985 = vmatpush.msra.mxu0 0.0
      %986 = vmatpush.msra.mxu0 %v953
      %987 = vmatpush.msra.mxu0 %v952
      %988 = vmatpush.msra.mxu0 %v951
      %989 = vmatpush.msra.mxu0 %v950
      %990 = vmatmul.f32.gmra.mxu0 %v969
      %v991 = vpop.f32.mrf.mxu0
      %v992 = vadd.f32 %v961, %v991
      %993 = vmatmul.f32.gmra.mxu0 %v972
      %v994 = vpop.f32.mrf.mxu0
      %v995 = vadd.f32 %v966, %v994
      %996 = vdwg.mxu0
      %v997 = vand.u32 2147483647, %v992
      %vm998 = vcmp.gt.f32.partialorder %v997, 1.0
      %v999 = vmax.f32 %v997, 1e-30
      %v1000 = vrcp.pop %v999
      %v1001 = vmul.f32 %v999, %v1000
      %v1002 = vsub.f32 1.0, %v1001
      %v1003 = vmul.f32 %v1000, %v1002
      %v1004 = vadd.f32 %v1000, %v1003
      %vm1005 = vweird.f32 %v999
      %vm1006 = vweird.f32 %v1000
      %vm1007 = vmor %vm1005, %vm1006
      %v1008 = vsel %vm1007, %v1000, %v1004
      %v1009 = vand.u32 2147483647, %v999
      %vm1010 = vcmp.eq.f32.partialorder %v1009, 8.507059e+37
      %v1011 = vand.u32 %v999, 2147483648
      %v1012 = vor.u32 1.1754944e-38, %v1011
      %v1013 = vsel %vm1010, %v1012, %v1008
      %v1014 = vmul.f32 1.0, %v1013
      %v1015 = vsel %vm998, %v1014, %v997
      %v1016 = vmul.f32 %v1015, %v1015
      %v1017 = vmul.f32 %v1016, -0.0117212
      %v1018 = vadd.f32 %v1017, 0.05265332
      %v1019 = vmul.f32 %v1018, %v1016
      %v1020 = vsub.f32 %v1019, 0.11643287
      %v1021 = vmul.f32 %v1020, %v1016
      %v1022 = vadd.f32 %v1021, 0.19354346
      %v1023 = vmul.f32 %v1022, %v1016
      %v1024 = vsub.f32 %v1023, 0.33262348
      %v1025 = vmul.f32 %v1024, %v1016
      %v1026 = vadd.f32 %v1025, 0.99997723
      %v1027 = vmul.f32 %v1015, %v1026
      %v1028 = vsub.f32 1.5707964, %v1027
      %v1029 = vsel %vm998, %v1028, %v1027
      %vm1030 = vcmp.lt.f32.partialorder %v992, 0.0
      %v1031 = vsub.f32 0.0, %v1029
      %v1032 = vsel %vm1030, %v1031, %v1029
      %v1033 = vmul.f32 %v1032, 1.272
      %v1034 = vmul.f32 %v1033, 1.442695
      %v1035 = vpow.pop %v1034
      %v1036 = vmul.f32 %v1035, %v819
      %v1037 = vadd.f32 %v1036, %v995
      %v1038 = vsel %vm820, %v1033, 0.0
      %v1039 = vrot.slane %v1038, 4
      %v1040 = vadd.f32 %v1038, %v1039
      %v1041 = vrot.slane %v1040, 2
      %v1042 = vadd.f32 %v1040, %v1041
      %v1043 = vrot.slane %v1042, 1
      %v1044 = vadd.f32 %v1042, %v1043
      %v1045 = vadd.f32 %v830, %v1044
      %s1046 = scalar_lea.vmem %s2, 16
      %v1047 = vld [vmem:[%s1046] sm:$0xff]
      %v1048 = vld [vmem:[%s1046 + $0x8] sm:$0xff]
      %s1049 = scalar_lea.vmem %s3, 16
      %v1050 = vld [vmem:[%s1049] sm:$0xff]
      %v1051 = vld [vmem:[%s1049 + $0x8] sm:$0xff]
      %1053 = vset.pattern.permute.xlu0 0
      %1054 = vperm.xlu0 %1053, %v1050
      %v1055 = vpop.permute.xlu0 %1054
      %1058 = vset.pattern.permute.xlu0 0
      %1059 = vperm.xlu0 %1058, %v1051
      %v1060 = vpop.permute.xlu0 %1059
      %v1063 = vsel %vm565, %v1047, 0
      %v1066 = vsel %vm565, %v1048, 0
      %1068 = vmatpush.msra.mxu0 0.0
      %1069 = vmatpush.msra.mxu0 0.0
      %1070 = vmatpush.msra.mxu0 0.0
      %1071 = vmatpush.msra.mxu0 0.0
      %1072 = vmatpush.msra.mxu0 0.0
      %1073 = vmatpush.msra.mxu0 0.0
      %1074 = vmatpush.msra.mxu0 0.0
      %1075 = vmatpush.msra.mxu0 0.0
      %1076 = vmatpush.msra.mxu0 0.0
      %1077 = vmatpush.msra.mxu0 0.0
      %1078 = vmatpush.msra.mxu0 0.0
      %1079 = vmatpush.msra.mxu0 0.0
      %1080 = vmatpush.msra.mxu0 0.0
      %1081 = vmatpush.msra.mxu0 0.0
      %1082 = vmatpush.msra.mxu0 %v1037
      %1083 = vmatpush.msra.mxu0 %v818
      %1084 = vmatmul.f32.gmra.mxu0 %v1063
      %v1085 = vpop.f32.mrf.mxu0
      %v1086 = vadd.f32 %v1055, %v1085
      %1087 = vmatmul.f32.gmra.mxu0 %v1066
      %v1088 = vpop.f32.mrf.mxu0
      %v1089 = vadd.f32 %v1060, %v1088
      %1090 = vdwg.mxu0
      %s1091 = scalar_lea.vmem %s4, 32
      %v1092 = vld [vmem:[%s1091] sm:$0xff]
      %v1093 = vld [vmem:[%s1091 + $0x8] sm:$0xff]
      %v1094 = vld [vmem:[%s1091 + $0x10] sm:$0xff]
      %v1095 = vld [vmem:[%s1091 + $0x18] sm:$0xff]
      %s1096 = scalar_lea.vmem %s5, 32
      %v1097 = vld [vmem:[%s1096] sm:$0xff]
      %v1098 = vld [vmem:[%s1096 + $0x8] sm:$0xff]
      %v1099 = vld [vmem:[%s1096 + $0x10] sm:$0xff]
      %v1100 = vld [vmem:[%s1096 + $0x18] sm:$0xff]
      %1102 = vset.pattern.permute.xlu0 0
      %1103 = vperm.xlu0 %1102, %v1097
      %v1104 = vpop.permute.xlu0 %1103
      %1107 = vset.pattern.permute.xlu0 0
      %1108 = vperm.xlu0 %1107, %v1098
      %v1109 = vpop.permute.xlu0 %1108
      %1112 = vset.pattern.permute.xlu0 0
      %1113 = vperm.xlu0 %1112, %v1099
      %v1114 = vpop.permute.xlu0 %1113
      %1117 = vset.pattern.permute.xlu0 0
      %1118 = vperm.xlu0 %1117, %v1100
      %v1119 = vpop.permute.xlu0 %1118
      %v1122 = vsel %vm565, %v1092, 0
      %v1125 = vsel %vm565, %v1093, 0
      %v1128 = vsel %vm565, %v1094, 0
      %v1131 = vsel %vm565, %v1095, 0
      %1133 = vmatpush.msra.mxu0 0.0
      %1134 = vmatpush.msra.mxu0 0.0
      %1135 = vmatpush.msra.mxu0 0.0
      %1136 = vmatpush.msra.mxu0 0.0
      %1137 = vmatpush.msra.mxu0 0.0
      %1138 = vmatpush.msra.mxu0 0.0
      %1139 = vmatpush.msra.mxu0 0.0
      %1140 = vmatpush.msra.mxu0 0.0
      %1141 = vmatpush.msra.mxu0 0.0
      %1142 = vmatpush.msra.mxu0 0.0
      %1143 = vmatpush.msra.mxu0 0.0
      %1144 = vmatpush.msra.mxu0 0.0
      %1145 = vmatpush.msra.mxu0 0.0
      %1146 = vmatpush.msra.mxu0 0.0
      %1147 = vmatpush.msra.mxu0 %v550
      %1148 = vmatpush.msra.mxu0 %v549
      %1149 = vmatmul.f32.gmra.mxu0 %v1122
      %v1150 = vpop.f32.mrf.mxu0
      %v1151 = vadd.f32 %v1104, %v1150
      %1152 = vmatmul.f32.gmra.mxu0 %v1125
      %v1153 = vpop.f32.mrf.mxu0
      %v1154 = vadd.f32 %v1109, %v1153
      %1155 = vmatmul.f32.gmra.mxu0 %v1128
      %v1156 = vpop.f32.mrf.mxu0
      %v1157 = vadd.f32 %v1114, %v1156
      %1158 = vmatmul.f32.gmra.mxu0 %v1131
      %v1159 = vpop.f32.mrf.mxu0
      %v1160 = vadd.f32 %v1119, %v1159
      %1161 = vdwg.mxu0
      %v1162 = vmax.f32 %v1151, 0.0
      %v1163 = vmax.f32 %v1154, 0.0
      %v1164 = vmax.f32 %v1157, 0.0
      %v1165 = vmax.f32 %v1160, 0.0
      %s1166 = scalar_lea.vmem %s6, 32
      %v1167 = vld [vmem:[%s1166] sm:$0xff]
      %v1168 = vld [vmem:[%s1166 + $0x8] sm:$0xff]
      %v1169 = vld [vmem:[%s1166 + $0x10] sm:$0xff]
      %v1170 = vld [vmem:[%s1166 + $0x18] sm:$0xff]
      %s1171 = scalar_lea.vmem %s7, 32
      %v1172 = vld [vmem:[%s1171] sm:$0xff]
      %v1173 = vld [vmem:[%s1171 + $0x8] sm:$0xff]
      %v1174 = vld [vmem:[%s1171 + $0x10] sm:$0xff]
      %v1175 = vld [vmem:[%s1171 + $0x18] sm:$0xff]
      %1177 = vset.pattern.permute.xlu0 0
      %1178 = vperm.xlu0 %1177, %v1172
      %v1179 = vpop.permute.xlu0 %1178
      %1182 = vset.pattern.permute.xlu0 0
      %1183 = vperm.xlu0 %1182, %v1173
      %v1184 = vpop.permute.xlu0 %1183
      %1187 = vset.pattern.permute.xlu0 0
      %1188 = vperm.xlu0 %1187, %v1174
      %v1189 = vpop.permute.xlu0 %1188
      %1192 = vset.pattern.permute.xlu0 0
      %1193 = vperm.xlu0 %1192, %v1175
      %v1194 = vpop.permute.xlu0 %1193
      %v1197 = vsel %vm696, %v1167, 0
      %v1200 = vsel %vm696, %v1168, 0
      %v1203 = vsel %vm696, %v1169, 0
      %v1206 = vsel %vm696, %v1170, 0
      %1208 = vmatpush.msra.mxu0 0.0
      %1209 = vmatpush.msra.mxu0 0.0
      %1210 = vmatpush.msra.mxu0 0.0
      %1211 = vmatpush.msra.mxu0 0.0
      %1212 = vmatpush.msra.mxu0 0.0
      %1213 = vmatpush.msra.mxu0 0.0
      %1214 = vmatpush.msra.mxu0 0.0
      %1215 = vmatpush.msra.mxu0 0.0
      %1216 = vmatpush.msra.mxu0 0.0
      %1217 = vmatpush.msra.mxu0 0.0
      %1218 = vmatpush.msra.mxu0 0.0
      %1219 = vmatpush.msra.mxu0 0.0
      %1220 = vmatpush.msra.mxu0 %v1165
      %1221 = vmatpush.msra.mxu0 %v1164
      %1222 = vmatpush.msra.mxu0 %v1163
      %1223 = vmatpush.msra.mxu0 %v1162
      %1224 = vmatmul.f32.gmra.mxu0 %v1197
      %v1225 = vpop.f32.mrf.mxu0
      %v1226 = vadd.f32 %v1179, %v1225
      %1227 = vmatmul.f32.gmra.mxu0 %v1200
      %v1228 = vpop.f32.mrf.mxu0
      %v1229 = vadd.f32 %v1184, %v1228
      %1230 = vmatmul.f32.gmra.mxu0 %v1203
      %v1231 = vpop.f32.mrf.mxu0
      %v1232 = vadd.f32 %v1189, %v1231
      %1233 = vmatmul.f32.gmra.mxu0 %v1206
      %v1234 = vpop.f32.mrf.mxu0
      %v1235 = vadd.f32 %v1194, %v1234
      %1236 = vdwg.mxu0
      %v1237 = vand.u32 2147483647, %v1226
      %v1238 = vand.u32 2147483647, %v1229
      %vm1239 = vcmp.gt.f32.partialorder %v1237, 1.0
      %vm1240 = vcmp.gt.f32.partialorder %v1238, 1.0
      %v1241 = vmax.f32 %v1237, 1e-30
      %v1242 = vmax.f32 %v1238, 1e-30
      %v1243 = vrcp.pop %v1241
      %v1244 = vmul.f32 %v1241, %v1243
      %v1245 = vsub.f32 1.0, %v1244
      %v1246 = vmul.f32 %v1243, %v1245
      %v1247 = vadd.f32 %v1243, %v1246
      %vm1248 = vweird.f32 %v1241
      %vm1249 = vweird.f32 %v1243
      %vm1250 = vmor %vm1248, %vm1249
      %v1251 = vsel %vm1250, %v1243, %v1247
      %v1252 = vand.u32 2147483647, %v1241
      %vm1253 = vcmp.eq.f32.partialorder %v1252, 8.507059e+37
      %v1254 = vand.u32 %v1241, 2147483648
      %v1255 = vor.u32 1.1754944e-38, %v1254
      %v1256 = vsel %vm1253, %v1255, %v1251
      %v1257 = vmul.f32 1.0, %v1256
      %v1258 = vrcp.pop %v1242
      %v1259 = vmul.f32 %v1242, %v1258
      %v1260 = vsub.f32 1.0, %v1259
      %v1261 = vmul.f32 %v1258, %v1260
      %v1262 = vadd.f32 %v1258, %v1261
      %vm1263 = vweird.f32 %v1242
      %vm1264 = vweird.f32 %v1258
      %vm1265 = vmor %vm1263, %vm1264
      %v1266 = vsel %vm1265, %v1258, %v1262
      %v1267 = vand.u32 2147483647, %v1242
      %vm1268 = vcmp.eq.f32.partialorder %v1267, 8.507059e+37
      %v1269 = vand.u32 %v1242, 2147483648
      %v1270 = vor.u32 1.1754944e-38, %v1269
      %v1271 = vsel %vm1268, %v1270, %v1266
      %v1272 = vmul.f32 1.0, %v1271
      %v1273 = vsel %vm1239, %v1257, %v1237
      %v1274 = vsel %vm1240, %v1272, %v1238
      %v1275 = vmul.f32 %v1273, %v1273
      %v1276 = vmul.f32 %v1274, %v1274
      %v1277 = vmul.f32 %v1275, -0.0117212
      %v1278 = vmul.f32 %v1276, -0.0117212
      %v1279 = vadd.f32 %v1277, 0.05265332
      %v1280 = vadd.f32 %v1278, 0.05265332
      %v1281 = vmul.f32 %v1279, %v1275
      %v1282 = vmul.f32 %v1280, %v1276
      %v1283 = vsub.f32 %v1281, 0.11643287
      %v1284 = vsub.f32 %v1282, 0.11643287
      %v1285 = vmul.f32 %v1283, %v1275
      %v1286 = vmul.f32 %v1284, %v1276
      %v1287 = vadd.f32 %v1285, 0.19354346
      %v1288 = vadd.f32 %v1286, 0.19354346
      %v1289 = vmul.f32 %v1287, %v1275
      %v1290 = vmul.f32 %v1288, %v1276
      %v1291 = vsub.f32 %v1289, 0.33262348
      %v1292 = vsub.f32 %v1290, 0.33262348
      %v1293 = vmul.f32 %v1291, %v1275
      %v1294 = vmul.f32 %v1292, %v1276
      %v1295 = vadd.f32 %v1293, 0.99997723
      %v1296 = vadd.f32 %v1294, 0.99997723
      %v1297 = vmul.f32 %v1273, %v1295
      %v1298 = vmul.f32 %v1274, %v1296
      %v1299 = vsub.f32 1.5707964, %v1297
      %v1300 = vsub.f32 1.5707964, %v1298
      %v1301 = vsel %vm1239, %v1299, %v1297
      %v1302 = vsel %vm1240, %v1300, %v1298
      %vm1303 = vcmp.lt.f32.partialorder %v1226, 0.0
      %vm1304 = vcmp.lt.f32.partialorder %v1229, 0.0
      %v1305 = vsub.f32 0.0, %v1301
      %v1306 = vsub.f32 0.0, %v1302
      %v1307 = vsel %vm1303, %v1305, %v1301
      %v1308 = vsel %vm1304, %v1306, %v1302
      %v1309 = vmul.f32 %v1307, 1.272
      %v1310 = vmul.f32 %v1308, 1.272
      %v1311 = vmul.f32 %v1309, 1.442695
      %v1312 = vpow.pop %v1311
      %v1313 = vmul.f32 %v1310, 1.442695
      %v1314 = vpow.pop %v1313
      %v1315 = vmul.f32 %v1312, %v1086
      %v1316 = vmul.f32 %v1314, %v1089
      %v1317 = vadd.f32 %v1315, %v1232
      %v1318 = vadd.f32 %v1316, %v1235
      %v1319 = vsel %vm820, %v1309, 0.0
      %v1320 = vsel %vm820, %v1310, 0.0
      %v1321 = vadd.f32 %v1319, %v1320
      %v1322 = vrot.slane %v1321, 4
      %v1323 = vadd.f32 %v1321, %v1322
      %v1324 = vrot.slane %v1323, 2
      %v1325 = vadd.f32 %v1323, %v1324
      %v1326 = vrot.slane %v1325, 1
      %v1327 = vadd.f32 %v1325, %v1326
      %v1328 = vadd.f32 %v1045, %v1327
      %s1329 = scalar_lea.vmem %s8, 32
      %v1330 = vld [vmem:[%s1329] sm:$0xff]
      %v1331 = vld [vmem:[%s1329 + $0x8] sm:$0xff]
      %v1332 = vld [vmem:[%s1329 + $0x10] sm:$0xff]
      %v1333 = vld [vmem:[%s1329 + $0x18] sm:$0xff]
      %s1334 = scalar_lea.vmem %s9, 32
      %v1335 = vld [vmem:[%s1334] sm:$0xff]
      %v1336 = vld [vmem:[%s1334 + $0x8] sm:$0xff]
      %v1337 = vld [vmem:[%s1334 + $0x10] sm:$0xff]
      %v1338 = vld [vmem:[%s1334 + $0x18] sm:$0xff]
      %v1340 = vsel %vm565, %v1335, 0
      %v1343 = vsel %vm565, %v1336, 0
      %v1346 = vsel %vm565, %v1337, 0
      %v1349 = vsel %vm565, %v1338, 0
      %1351 = vmatpush.msra.mxu0 0.0
      %1352 = vmatpush.msra.mxu0 0.0
      %1353 = vmatpush.msra.mxu0 0.0
      %1354 = vmatpush.msra.mxu0 0.0
      %1355 = vmatpush.msra.mxu0 0.0
      %1356 = vmatpush.msra.mxu0 0.0
      %1357 = vmatpush.msra.mxu0 0.0
      %1358 = vmatpush.msra.mxu0 0.0
      %1359 = vmatpush.msra.mxu0 0.0
      %1360 = vmatpush.msra.mxu0 0.0
      %1361 = vmatpush.msra.mxu0 0.0
      %1362 = vmatpush.msra.mxu0 0.0
      %1363 = vmatpush.msra.mxu0 0.0
      %1364 = vmatpush.msra.mxu0 0.0
      %1365 = vmatpush.msra.mxu0 %v550
      %1366 = vmatpush.msra.mxu0 %v549
      %1367 = vmatmul.f32.gmra.mxu0 %v1340
      %v1368 = vpop.f32.mrf.mxu0
      %v1369 = vadd.f32 0.0, %v1368
      %1370 = vmatmul.f32.gmra.mxu0 %v1343
      %v1371 = vpop.f32.mrf.mxu0
      %v1372 = vadd.f32 0.0, %v1371
      %1373 = vmatmul.f32.gmra.mxu0 %v1346
      %v1374 = vpop.f32.mrf.mxu0
      %v1375 = vadd.f32 0.0, %v1374
      %1376 = vmatmul.f32.gmra.mxu0 %v1349
      %v1377 = vpop.f32.mrf.mxu0
      %v1378 = vadd.f32 0.0, %v1377
      %1379 = vdwg.mxu0
      %v1381 = vsel %vm880, %v1330, 0
      %v1384 = vsel %vm880, %v1331, 0
      %v1387 = vsel %vm880, %v1332, 0
      %v1390 = vsel %vm880, %v1333, 0
      %1392 = vmatpush.msra.mxu0 0.0
      %1393 = vmatpush.msra.mxu0 0.0
      %1394 = vmatpush.msra.mxu0 0.0
      %1395 = vmatpush.msra.mxu0 0.0
      %1396 = vmatpush.msra.mxu0 0.0
      %1397 = vmatpush.msra.mxu0 0.0
      %1398 = vmatpush.msra.mxu0 0.0
      %1399 = vmatpush.msra.mxu0 0.0
      %1400 = vmatpush.msra.mxu0 0.0
      %1401 = vmatpush.msra.mxu0 0.0
      %1402 = vmatpush.msra.mxu0 0.0
      %1403 = vmatpush.msra.mxu0 0.0
      %1404 = vmatpush.msra.mxu0 0.0
      %1405 = vmatpush.msra.mxu0 0.0
      %1406 = vmatpush.msra.mxu0 0.0
      %1407 = vmatpush.msra.mxu0 %v1317
      %1408 = vmatmul.f32.gmra.mxu0 %v1381
      %v1409 = vpop.f32.mrf.mxu0
      %v1410 = vadd.f32 %v1369, %v1409
      %1411 = vmatmul.f32.gmra.mxu0 %v1384
      %v1412 = vpop.f32.mrf.mxu0
      %v1413 = vadd.f32 %v1372, %v1412
      %1414 = vmatmul.f32.gmra.mxu0 %v1387
      %v1415 = vpop.f32.mrf.mxu0
      %v1416 = vadd.f32 %v1375, %v1415
      %1417 = vmatmul.f32.gmra.mxu0 %v1390
      %v1418 = vpop.f32.mrf.mxu0
      %v1419 = vadd.f32 %v1378, %v1418
      %1420 = vdwg.mxu0
      %s1421 = scalar_lea.vmem %s10, 32
      %v1422 = vld [vmem:[%s1421] sm:$0xff]
      %v1423 = vld [vmem:[%s1421 + $0x8] sm:$0xff]
      %v1424 = vld [vmem:[%s1421 + $0x10] sm:$0xff]
      %v1425 = vld [vmem:[%s1421 + $0x18] sm:$0xff]
      %1427 = vset.pattern.permute.xlu0 0
      %1428 = vperm.xlu0 %1427, %v1422
      %v1429 = vpop.permute.xlu0 %1428
      %1432 = vset.pattern.permute.xlu0 0
      %1433 = vperm.xlu0 %1432, %v1423
      %v1434 = vpop.permute.xlu0 %1433
      %1437 = vset.pattern.permute.xlu0 0
      %1438 = vperm.xlu0 %1437, %v1424
      %v1439 = vpop.permute.xlu0 %1438
      %1442 = vset.pattern.permute.xlu0 0
      %1443 = vperm.xlu0 %1442, %v1425
      %v1444 = vpop.permute.xlu0 %1443
      %v1446 = vadd.f32 %v1410, %v1429
      %v1447 = vadd.f32 %v1413, %v1434
      %v1448 = vadd.f32 %v1416, %v1439
      %v1449 = vadd.f32 %v1419, %v1444
      %v1450 = vmax.f32 %v1446, 0.0
      %v1451 = vmax.f32 %v1447, 0.0
      %v1452 = vmax.f32 %v1448, 0.0
      %v1453 = vmax.f32 %v1449, 0.0
      %s1454 = scalar_lea.vmem %s11, 16
      %v1455 = vld [vmem:[%s1454] sm:$0xff]
      %v1456 = vld [vmem:[%s1454 + $0x8] sm:$0xff]
      %s1457 = scalar_lea.vmem %s12, 16
      %v1458 = vld [vmem:[%s1457] sm:$0xff]
      %v1459 = vld [vmem:[%s1457 + $0x8] sm:$0xff]
      %1461 = vset.pattern.permute.xlu0 0
      %1462 = vperm.xlu0 %1461, %v1458
      %v1463 = vpop.permute.xlu0 %1462
      %1466 = vset.pattern.permute.xlu0 0
      %1467 = vperm.xlu0 %1466, %v1459
      %v1468 = vpop.permute.xlu0 %1467
      %v1471 = vsel %vm696, %v1455, 0
      %v1474 = vsel %vm696, %v1456, 0
      %1476 = vmatpush.msra.mxu0 0.0
      %1477 = vmatpush.msra.mxu0 0.0
      %1478 = vmatpush.msra.mxu0 0.0
      %1479 = vmatpush.msra.mxu0 0.0
      %1480 = vmatpush.msra.mxu0 0.0
      %1481 = vmatpush.msra.mxu0 0.0
      %1482 = vmatpush.msra.mxu0 0.0
      %1483 = vmatpush.msra.mxu0 0.0
      %1484 = vmatpush.msra.mxu0 0.0
      %1485 = vmatpush.msra.mxu0 0.0
      %1486 = vmatpush.msra.mxu0 0.0
      %1487 = vmatpush.msra.mxu0 0.0
      %1488 = vmatpush.msra.mxu0 %v1453
      %1489 = vmatpush.msra.mxu0 %v1452
      %1490 = vmatpush.msra.mxu0 %v1451
      %1491 = vmatpush.msra.mxu0 %v1450
      %1492 = vmatmul.f32.gmra.mxu0 %v1471
      %v1493 = vpop.f32.mrf.mxu0
      %v1494 = vadd.f32 %v1463, %v1493
      %1495 = vmatmul.f32.gmra.mxu0 %v1474
      %v1496 = vpop.f32.mrf.mxu0
      %v1497 = vadd.f32 %v1468, %v1496
      %1498 = vdwg.mxu0
      %v1499 = vand.u32 2147483647, %v1494
      %vm1500 = vcmp.gt.f32.partialorder %v1499, 1.0
      %v1501 = vmax.f32 %v1499, 1e-30
      %v1502 = vrcp.pop %v1501
      %v1503 = vmul.f32 %v1501, %v1502
      %v1504 = vsub.f32 1.0, %v1503
      %v1505 = vmul.f32 %v1502, %v1504
      %v1506 = vadd.f32 %v1502, %v1505
      %vm1507 = vweird.f32 %v1501
      %vm1508 = vweird.f32 %v1502
      %vm1509 = vmor %vm1507, %vm1508
      %v1510 = vsel %vm1509, %v1502, %v1506
      %v1511 = vand.u32 2147483647, %v1501
      %vm1512 = vcmp.eq.f32.partialorder %v1511, 8.507059e+37
      %v1513 = vand.u32 %v1501, 2147483648
      %v1514 = vor.u32 1.1754944e-38, %v1513
      %v1515 = vsel %vm1512, %v1514, %v1510
      %v1516 = vmul.f32 1.0, %v1515
      %v1517 = vsel %vm1500, %v1516, %v1499
      %v1518 = vmul.f32 %v1517, %v1517
      %v1519 = vmul.f32 %v1518, -0.0117212
      %v1520 = vadd.f32 %v1519, 0.05265332
      %v1521 = vmul.f32 %v1520, %v1518
      %v1522 = vsub.f32 %v1521, 0.11643287
      %v1523 = vmul.f32 %v1522, %v1518
      %v1524 = vadd.f32 %v1523, 0.19354346
      %v1525 = vmul.f32 %v1524, %v1518
      %v1526 = vsub.f32 %v1525, 0.33262348
      %v1527 = vmul.f32 %v1526, %v1518
      %v1528 = vadd.f32 %v1527, 0.99997723
      %v1529 = vmul.f32 %v1517, %v1528
      %v1530 = vsub.f32 1.5707964, %v1529
      %v1531 = vsel %vm1500, %v1530, %v1529
      %vm1532 = vcmp.lt.f32.partialorder %v1494, 0.0
      %v1533 = vsub.f32 0.0, %v1531
      %v1534 = vsel %vm1532, %v1533, %v1531
      %v1535 = vmul.f32 %v1534, 1.272
      %v1536 = vmul.f32 %v1535, 1.442695
      %v1537 = vpow.pop %v1536
      %v1538 = vmul.f32 %v1537, %v1318
      %v1539 = vadd.f32 %v1538, %v1497
      %v1540 = vsel %vm820, %v1535, 0.0
      %v1541 = vrot.slane %v1540, 4
      %v1542 = vadd.f32 %v1540, %v1541
      %v1543 = vrot.slane %v1542, 2
      %v1544 = vadd.f32 %v1542, %v1543
      %v1545 = vrot.slane %v1544, 1
      %v1546 = vadd.f32 %v1544, %v1545
      %v1547 = vadd.f32 %v1328, %v1546
      %1548 = vst.msk [vmem:[%s540] sm:$0xff] %vm820, %v1317
      %1549 = vst.msk [vmem:[%s540 + $0x8] sm:$0xff] %vm820, %v1539
      %vm1550 = vcmask 516096
      %1551 = vst.msk [vmem:[%s546] sm:$0x1] %vm1550, %v1547
      %p1552 = scmp.lt.s32.totalorder %s30, 1
      %s1553 = scalar_select %p1552, %s30, 1
      %p1554 = scmp.lt.s32.totalorder %s31, 0
      %s1555 = scalar_select %p1554, %s31, 0
      %s1556 = smul.addr %s1553, 2
      %s1557 = sadd.s32 %s1555, %s1556
      %s1558 = smul.addr %s1557, 8
      %s1559 = scalar_lea.vmem %s13, %s1558
      %p1560 = scmp.lt.s32.totalorder %s30, 1
      %s1561 = scalar_select %p1560, %s30, 1
      %p1562 = scmp.lt.s32.totalorder %s31, 0
      %s1563 = scalar_select %p1562, %s31, 0
      %s1564 = sadd.s32 %s1563, %s1561
      %s1565 = scalar_lea.vmem %s14, %s1564
      // Predicated region
      $region73: #{_lambda_.1} parent=71 // pred_check
        %p1566 = pneg %p345
      $region74: #{_lambda_.1} parent=71 // pred_check_branch
        %1568 = sbr.rel (%p1566) target = $region76
      $region75: #{_lambda_.1} parent=71 // pred_region
        _
      $region76: #{_lambda_.1} parent=71 // pred_fallthru
        _
      // Predicated region
      $region77: #{_lambda_.1} parent=71 // pred_check
        %p1569 = pneg %p373
      $region78: #{_lambda_.1} parent=71 // pred_check_branch
        %1571 = sbr.rel (%p1569) target = $region80
      $region79: #{_lambda_.1} parent=71 // pred_region
        _
      $region80: #{_lambda_.1} parent=71 // pred_fallthru
        _
    $region72: #{_lambda_.1} parent=5 // pred_fallthru
      _
    %p1572 = scmp.le.s32.totalorder 2, %s21
    // Predicated region
    $region81: #{_lambda_.1} parent=5 // pred_check
      %p1573 = pneg %p1572
    $region82: #{_lambda_.1} parent=5 // pred_check_branch
      %1575 = sbr.rel (%p1573) target = $region84
    $region83: #{_lambda_.1} parent=5 // pred_region
      %s1576 = ssub.s32 %s21, 2
      // Predicated region
      $region85: #{_lambda_.1} parent=83 // pred_check
        %p1577 = pneg %p351
      $region86: #{_lambda_.1} parent=83 // pred_check_branch
        %1579 = sbr.rel (%p1577) target = $region88
      $region87: #{_lambda_.1} parent=83 // pred_region
        %p1580 = scmp.lt.s32.totalorder %s32, 1
        %s1581 = scalar_select %p1580, %s32, 1
        %p1582 = scmp.lt.s32.totalorder %s33, 0
        %s1583 = scalar_select %p1582, %s33, 0
        %s1584 = smul.addr %s1581, 2
        %s1585 = sadd.s32 %s1583, %s1584
        %s1586 = smul.addr %s1585, 8
        %s1587 = scalar_lea.vmem %s13, %s1586
      $region88: #{_lambda_.1} parent=83 // pred_fallthru
        _
      // Predicated region
      $region89: #{_lambda_.1} parent=83 // pred_check
        %p1588 = pneg %p379
      $region90: #{_lambda_.1} parent=83 // pred_check_branch
        %1590 = sbr.rel (%p1588) target = $region92
      $region91: #{_lambda_.1} parent=83 // pred_region
        %p1591 = scmp.lt.s32.totalorder %s32, 1
        %s1592 = scalar_select %p1591, %s32, 1
        %p1593 = scmp.lt.s32.totalorder %s33, 0
        %s1594 = scalar_select %p1593, %s33, 0
        %s1595 = sadd.s32 %s1594, %s1592
        %s1596 = scalar_lea.vmem %s14, %s1595
      $region92: #{_lambda_.1} parent=83 // pred_fallthru
        _
    $region84: #{_lambda_.1} parent=5 // pred_fallthru
      _
  $region6: #{_lambda_.1} parent=0 // loop_footer
    %s25 = sadd.s32 1, %s21
  $region7: #{_lambda_.1} parent=0 // loop_footer_branch
    %20 = sbr.rel target = $region3
  $region8: #{_lambda_.1} parent=0 // loop_exit
    _

</llo_original>
